<compile_context>
chip_gen: v7x
topology: tpu7x:2x2x1
jax: 0.10.0
libtpu: 0.0.40
codegen_flags: <defaults>
</compile_context>

<pallas_src>
import jax
import jax.numpy as jnp
from jax.experimental import pallas as pl
from jax.experimental.pallas import tpu as pltpu


def _round_up(n, m):
    return ((n + m - 1) // m) * m


def _ffn_kernel(x_ref, w1a_ref, w1g_ref, b1a_ref, b1g_ref, w2_ref, b2_ref,
                o_ref, acc_ref):
    # x_ref:   (TM, D)        token tile
    # w1a/w1g: (D, TH)        value / gate halves of W1 (hidden chunk)
    # b1a/b1g: (1, TH)
    # w2_ref:  (TH, D)        matching hidden chunk of W2
    # b2_ref:  (1, D)
    # o_ref:   (TM, D)        output tile (resident across the hidden axis)
    # acc_ref: (TM, D) f32    accumulator scratch
    k = pl.program_id(1)

    @pl.when(k == 0)
    def _():
        acc_ref[...] = jnp.zeros_like(acc_ref)

    x = x_ref[...]  # native dtype straight to the MXU; accumulate in f32.
    a = jnp.dot(x, w1a_ref[...], preferred_element_type=jnp.float32)
    a = a + b1a_ref[...].astype(jnp.float32)
    g = jnp.dot(x, w1g_ref[...], preferred_element_type=jnp.float32)
    g = g + b1g_ref[...].astype(jnp.float32)

    # Exact (erf) GELU on gates, elementwise in f32.
    gelu_g = 0.5 * g * (1.0 + jax.lax.erf(g * jnp.float32(0.7071067811865476)))
    y = a * gelu_g

    # Dropout(p=0.0) == identity.

    # Second linear, accumulated over hidden chunks.
    acc_ref[...] += jnp.dot(y.astype(w2_ref.dtype), w2_ref[...],
                            preferred_element_type=jnp.float32)

    @pl.when(k == pl.num_programs(1) - 1)
    def _():
        o_ref[...] = (acc_ref[...]
                      + b2_ref[...].astype(jnp.float32)).astype(o_ref.dtype)


def feed_forward(x, w1, b1, w2, b2, *, tm=256, th=256):
    """x: (B, S, D). w1: (D, 2H), b1: (2H,), w2: (H, D), b2: (D,)."""
    B, S, D = x.shape
    two_h = w1.shape[1]
    H = two_h // 2
    assert w2.shape == (H, D)
    T = B * S

    # Clamp tiles to the problem size (keep 8-row sublane alignment).
    tm = min(tm, _round_up(T, 8))
    th = min(th, H)
    assert H % th == 0, "hidden dim must be divisible by the hidden chunk"

    # Pad the token axis so the grid divides evenly (rows are independent, so
    # padded rows are just dropped afterwards).
    Tp = _round_up(T, tm)
    x2d = x.reshape(T, D)
    if Tp != T:
        x2d = jnp.pad(x2d, ((0, Tp - T), (0, 0)))

    # Split W1/b1 into value/gate halves outside the kernel -> two aligned dots.
    w1a, w1g = w1[:, :H], w1[:, H:]
    b1a = b1[:H].reshape(1, H)
    b1g = b1[H:].reshape(1, H)
    b2_2d = b2.reshape(1, D)

    grid = (Tp // tm, H // th)

    itemsize = x.dtype.itemsize
    cost = pl.CostEstimate(
        flops=2 * T * D * two_h + 2 * T * H * D,
        transcendentals=T * H,
        bytes_accessed=(x2d.size + T * D) * itemsize
        + (w1.size + w2.size) * w1.dtype.itemsize
        + (b1.size + b2.size) * b1.dtype.itemsize,
    )

    out2d = pl.pallas_call(
        _ffn_kernel,
        out_shape=jax.ShapeDtypeStruct((Tp, D), x.dtype),
        grid_spec=pltpu.PrefetchScalarGridSpec(
            num_scalar_prefetch=0,
            grid=grid,
            in_specs=[
                pl.BlockSpec((tm, D), lambda i, k: (i, 0)),   # x tile
                pl.BlockSpec((D, th), lambda i, k: (0, k)),   # W1 value half
                pl.BlockSpec((D, th), lambda i, k: (0, k)),   # W1 gate half
                pl.BlockSpec((1, th), lambda i, k: (0, k)),   # b1 value half
                pl.BlockSpec((1, th), lambda i, k: (0, k)),   # b1 gate half
                pl.BlockSpec((th, D), lambda i, k: (k, 0)),   # W2 chunk
                pl.BlockSpec((1, D), lambda i, k: (0, 0)),    # b2
            ],
            out_specs=pl.BlockSpec((tm, D), lambda i, k: (i, 0)),
            scratch_shapes=[pltpu.VMEM((tm, D), jnp.float32)],
        ),
        compiler_params=pltpu.CompilerParams(
            dimension_semantics=("parallel", "arbitrary"),
            vmem_limit_bytes=48 * 1024 * 1024),
        cost_estimate=cost,
    )(x2d, w1a, w1g, b1a, b1g, w2, b2_2d)

    if Tp != T:
        out2d = out2d[:T]
    return out2d.reshape(B, S, D)


def reference(x, w1, b1, w2, b2):
    hi = jax.lax.Precision.HIGHEST
    h = jnp.einsum("bsd,de->bse", x, w1, precision=hi) + b1
    H = w1.shape[1] // 2
    a, g = h[..., :H], h[..., H:]
    y = a * jax.nn.gelu(g, approximate=False)
    return jnp.einsum("bsh,hd->bsd", y, w2, precision=hi) + b2


if __name__ == "__main__":
    # Module config: FeedForward(dim=128, mult=4.0) -> H = 512, first linear
    # outputs 2H = 1024 features. Lane-dense D (multiple of 128).
    B, S, D = 2, 256, 128
    mult = 4.0
    H = int(D * mult)

    key = jax.random.PRNGKey(0)
    kx, k1, kb1, k2, kb2 = jax.random.split(key, 5)

    x = jax.random.normal(kx, (B, S, D), dtype=jnp.float32)
    # Deterministic synthetic parameters (nn.Linear-like scale).
    w1 = jax.random.normal(k1, (D, 2 * H), dtype=jnp.float32) * (1.0 / jnp.sqrt(D))
    b1 = jax.random.normal(kb1, (2 * H,), dtype=jnp.float32) * 0.01
    w2 = jax.random.normal(k2, (H, D), dtype=jnp.float32) * (1.0 / jnp.sqrt(H))
    b2 = jax.random.normal(kb2, (D,), dtype=jnp.float32) * 0.01

    out = feed_forward(x, w1, b1, w2, b2, tm=256, th=256)
    out = jax.block_until_ready(out)

    ref = reference(x, w1, b1, w2, b2)
    assert out.shape == (B, S, D)
    assert jnp.allclose(out, ref, atol=1e-3, rtol=1e-3), (
        f"max err {jnp.max(jnp.abs(out - ref))}")

    print("KERNEL_OK")
</pallas_src>

<mosaic_0001>
module attributes {stable_mosaic.version = 11 : i64} {
  func.func @_ffn_kernel(%arg0: i32, %arg1: i32, %arg2: memref<256x128xf32, #tpu.memory_space<vmem>>, %arg3: memref<128x256xf32, #tpu.memory_space<vmem>>, %arg4: memref<128x256xf32, #tpu.memory_space<vmem>>, %arg5: memref<1x256xf32, #tpu.memory_space<vmem>>, %arg6: memref<1x256xf32, #tpu.memory_space<vmem>>, %arg7: memref<256x128xf32, #tpu.memory_space<vmem>>, %arg8: memref<1x128xf32, #tpu.memory_space<vmem>>, %arg9: memref<256x128xf32, #tpu.memory_space<vmem>>, %arg10: memref<256x128xf32, #tpu.memory_space<vmem>>) attributes {dimension_semantics = [#tpu.dimension_semantics<parallel>, #tpu.dimension_semantics<arbitrary>], iteration_bounds = array<i64: 2, 2>, scalar_prefetch = 0 : i64, scratch_operands = 1 : i64, tpu.core_type = #tpu.core_type<tc>, window_params = [{transform_indices = @transform_0, window_bounds = array<i64: 256, 128>}, {transform_indices = @transform_1, window_bounds = array<i64: 128, 256>}, {transform_indices = @transform_2, window_bounds = array<i64: 128, 256>}, {transform_indices = @transform_3, window_bounds = array<i64: 1, 256>}, {transform_indices = @transform_4, window_bounds = array<i64: 1, 256>}, {transform_indices = @transform_5, window_bounds = array<i64: 256, 128>}, {pipeline_mode = #tpu.pipeline_mode<synchronous>, transform_indices = @transform_6, window_bounds = array<i64: 1, 128>}, {transform_indices = @transform_7, window_bounds = array<i64: 256, 128>}]} {
    %c0_i32 = arith.constant 0 : i32
    %0 = arith.cmpi eq, %arg1, %c0_i32 : i32
    %1 = arith.extui %0 : i1 to i32
    %c0_i32_0 = arith.constant 0 : i32
    %2 = arith.cmpi ne, %1, %c0_i32_0 : i32
    scf.if %2 {
      %cst_22 = arith.constant 0.000000e+00 : f32
      %31 = vector.broadcast %cst_22 : f32 to vector<256x128xf32>
      %c0_23 = arith.constant 0 : index
      %c0_24 = arith.constant 0 : index
      %32 = vector.load %arg10[%c0_23, %c0_24] : memref<256x128xf32, #tpu.memory_space<vmem>>, vector<256x128xf32>
      tpu.vector_store %arg10[%c0_23, %c0_24], %31 {strides = array<i32>} : memref<256x128xf32, #tpu.memory_space<vmem>>, vector<256x128xf32>,
    } else {
    }
    %c0 = arith.constant 0 : index
    %c0_1 = arith.constant 0 : index
    %3 = vector.load %arg2[%c0, %c0_1] : memref<256x128xf32, #tpu.memory_space<vmem>>, vector<256x128xf32>
    %c0_2 = arith.constant 0 : index
    %c0_3 = arith.constant 0 : index
    %4 = vector.load %arg3[%c0_2, %c0_3] : memref<128x256xf32, #tpu.memory_space<vmem>>, vector<128x256xf32>
    %cst = arith.constant dense<0.000000e+00> : vector<256x256xf32>
    %5 = tpu.matmul %3, %4, %cst {dimension_numbers = #tpu.dot_dimension_numbers<[1], [0], [0], [1], [0, 0, 1, 1], [], []>} : vector<256x128xf32>, vector<128x256xf32>, vector<256x256xf32> -> vector<256x256xf32>
    %c0_4 = arith.constant 0 : index
    %c0_5 = arith.constant 0 : index
    %6 = vector.load %arg5[%c0_4, %c0_5] : memref<1x256xf32, #tpu.memory_space<vmem>>, vector<1x256xf32>
    %7 = vector.broadcast %6 : vector<1x256xf32> to vector<256x256xf32>
    %8 = arith.addf %5, %7 : vector<256x256xf32>
    %c0_6 = arith.constant 0 : index
    %c0_7 = arith.constant 0 : index
    %9 = vector.load %arg4[%c0_6, %c0_7] : memref<128x256xf32, #tpu.memory_space<vmem>>, vector<128x256xf32>
    %cst_8 = arith.constant dense<0.000000e+00> : vector<256x256xf32>
    %10 = tpu.matmul %3, %9, %cst_8 {dimension_numbers = #tpu.dot_dimension_numbers<[1], [0], [0], [1], [0, 0, 1, 1], [], []>} : vector<256x128xf32>, vector<128x256xf32>, vector<256x256xf32> -> vector<256x256xf32>
    %c0_9 = arith.constant 0 : index
    %c0_10 = arith.constant 0 : index
    %11 = vector.load %arg6[%c0_9, %c0_10] : memref<1x256xf32, #tpu.memory_space<vmem>>, vector<1x256xf32>
    %12 = vector.broadcast %11 : vector<1x256xf32> to vector<256x256xf32>
    %13 = arith.addf %10, %12 : vector<256x256xf32>
    %cst_11 = arith.constant 5.000000e-01 : f32
    %14 = vector.broadcast %cst_11 : f32 to vector<256x256xf32>
    %15 = arith.mulf %14, %13 : vector<256x256xf32>
    %cst_12 = arith.constant 0.707106769 : f32
    %16 = vector.broadcast %cst_12 : f32 to vector<256x256xf32>
    %17 = arith.mulf %13, %16 : vector<256x256xf32>
    %18 = math.erf %17 : vector<256x256xf32>
    %cst_13 = arith.constant 1.000000e+00 : f32
    %19 = vector.broadcast %cst_13 : f32 to vector<256x256xf32>
    %20 = arith.addf %19, %18 : vector<256x256xf32>
    %21 = arith.mulf %15, %20 : vector<256x256xf32>
    %22 = arith.mulf %8, %21 : vector<256x256xf32>
    %c0_14 = arith.constant 0 : index
    %c0_15 = arith.constant 0 : index
    %23 = vector.load %arg10[%c0_14, %c0_15] : memref<256x128xf32, #tpu.memory_space<vmem>>, vector<256x128xf32>
    %c0_16 = arith.constant 0 : index
    %c0_17 = arith.constant 0 : index
    %24 = vector.load %arg7[%c0_16, %c0_17] : memref<256x128xf32, #tpu.memory_space<vmem>>, vector<256x128xf32>
    %cst_18 = arith.constant dense<0.000000e+00> : vector<256x128xf32>
    %25 = tpu.matmul %22, %24, %cst_18 {dimension_numbers = #tpu.dot_dimension_numbers<[1], [0], [0], [1], [0, 0, 1, 1], [], []>} : vector<256x256xf32>, vector<256x128xf32>, vector<256x128xf32> -> vector<256x128xf32>
    %26 = arith.addf %23, %25 : vector<256x128xf32>
    %c0_19 = arith.constant 0 : index
    %c0_20 = arith.constant 0 : index
    %27 = vector.load %arg10[%c0_19, %c0_20] : memref<256x128xf32, #tpu.memory_space<vmem>>, vector<256x128xf32>
    tpu.vector_store %arg10[%c0_19, %c0_20], %26 {strides = array<i32>} : memref<256x128xf32, #tpu.memory_space<vmem>>, vector<256x128xf32>,
    %c1_i32 = arith.constant 1 : i32
    %28 = arith.cmpi eq, %arg1, %c1_i32 : i32
    %29 = arith.extui %28 : i1 to i32
    %c0_i32_21 = arith.constant 0 : i32
    %30 = arith.cmpi ne, %29, %c0_i32_21 : i32
    scf.if %30 {
      %c0_22 = arith.constant 0 : index
      %c0_23 = arith.constant 0 : index
      %31 = vector.load %arg10[%c0_22, %c0_23] : memref<256x128xf32, #tpu.memory_space<vmem>>, vector<256x128xf32>
      %c0_24 = arith.constant 0 : index
      %c0_25 = arith.constant 0 : index
      %32 = vector.load %arg8[%c0_24, %c0_25] : memref<1x128xf32, #tpu.memory_space<vmem>>, vector<1x128xf32>
      %33 = vector.broadcast %32 : vector<1x128xf32> to vector<256x128xf32>
      %34 = arith.addf %31, %33 : vector<256x128xf32>
      %c0_26 = arith.constant 0 : index
      %c0_27 = arith.constant 0 : index
      %35 = vector.load %arg9[%c0_26, %c0_27] : memref<256x128xf32, #tpu.memory_space<vmem>>, vector<256x128xf32>
      tpu.vector_store %arg9[%c0_26, %c0_27], %34 {strides = array<i32>} : memref<256x128xf32, #tpu.memory_space<vmem>>, vector<256x128xf32>,
    } else {
    }
    return
  }
  func.func @transform_0(%arg0: i32, %arg1: i32) -> (i32, i32) {
    %c0_i32 = arith.constant 0 : i32
    %c0_i32_0 = arith.constant 0 : i32
    return %arg0, %c0_i32 : i32, i32
  }
  func.func @transform_1(%arg0: i32, %arg1: i32) -> (i32, i32) {
    %c0_i32 = arith.constant 0 : i32
    %c0_i32_0 = arith.constant 0 : i32
    return %c0_i32, %arg1 : i32, i32
  }
  func.func @transform_2(%arg0: i32, %arg1: i32) -> (i32, i32) {
    %c0_i32 = arith.constant 0 : i32
    %c0_i32_0 = arith.constant 0 : i32
    return %c0_i32, %arg1 : i32, i32
  }
  func.func @transform_3(%arg0: i32, %arg1: i32) -> (i32, i32) {
    %c0_i32 = arith.constant 0 : i32
    %c0_i32_0 = arith.constant 0 : i32
    return %c0_i32, %arg1 : i32, i32
  }
  func.func @transform_4(%arg0: i32, %arg1: i32) -> (i32, i32) {
    %c0_i32 = arith.constant 0 : i32
    %c0_i32_0 = arith.constant 0 : i32
    return %c0_i32, %arg1 : i32, i32
  }
  func.func @transform_5(%arg0: i32, %arg1: i32) -> (i32, i32) {
    %c0_i32 = arith.constant 0 : i32
    %c0_i32_0 = arith.constant 0 : i32
    return %arg1, %c0_i32 : i32, i32
  }
  func.func @transform_6(%arg0: i32, %arg1: i32) -> (i32, i32) {
    %c0_i32 = arith.constant 0 : i32
    %c0_i32_0 = arith.constant 0 : i32
    %c0_i32_1 = arith.constant 0 : i32
    return %c0_i32, %c0_i32_0 : i32, i32
  }
  func.func @transform_7(%arg0: i32, %arg1: i32) -> (i32, i32) {
    %c0_i32 = arith.constant 0 : i32
    %c0_i32_0 = arith.constant 0 : i32
    return %arg0, %c0_i32 : i32, i32
  }
}

</mosaic_0001>

<llo_original>
// kernel: tpu_custom_call.1
$region0: #{tpu_custom_call.1}
  #allocation0 [shape = 'u32[]', space=smem, size = 0x4, offset = 0x4, fixed_abs, tag = 'smem constant byte address 0x4 - core index']
  #allocation1 [shape = 'u32[144,128]{1,0:T(1,128)}', space=vmem, size = 0x12000, scoped, tag = 'internal scratch']
  #allocation2 [shape = 'f32[256,128]{1,0:T(8,128)}', space=vmem, size = 0x20000, scoped, tag = 'scratch operand']
  %s0 = inlined_call_operand.hbm [shape: f32[512,128], index: 0, kind: input, shape index: {}]
  %s1 = inlined_call_operand.hbm [shape: f32[128,512], index: 1, kind: input, shape index: {}]
  %s2 = inlined_call_operand.hbm [shape: f32[128,512], index: 2, kind: input, shape index: {}]
  %s3 = inlined_call_operand.vmem [shape: f32[1,512], index: 3, kind: input, shape index: {}]
  %s4 = inlined_call_operand.vmem [shape: f32[1,512], index: 4, kind: input, shape index: {}]
  %s5 = inlined_call_operand.hbm [shape: f32[512,128], index: 5, kind: input, shape index: {}]
  %s6 = inlined_call_operand.vmem [shape: f32[1,128], index: 6, kind: input, shape index: {}]
  %s7 = inlined_call_operand.hbm [shape: f32[512,128], index: 7, kind: output, shape index: {}]
  %s8 = sld [smem:[#allocation0]]
  $region85: #{tpu_custom_call.1} parent=0
    _
  %s10 = ssub.s32 1, %s8
  %s11 = scalar_select 0, %s10, %s8
  $region1: #{tpu_custom_call.1} parent=0
    #allocation3 [shape = 'u8[262144]{0}', space=vmem, size = 0x40000, scoped, tag = 'input window, operand 0']
    #allocation4 [shape = 's32[2]{0}', space=sflag, size = 0x8, scoped, tag = 'scoped memory for tpu_custom_call.1']
    #allocation5 [shape = 's32[2]{0}', space=sflag, size = 0x8, scoped, tag = 'scoped memory for tpu_custom_call.1']
    #allocation6 [shape = 'u8[262144]{0}', space=vmem, size = 0x40000, scoped, tag = 'input window, operand 1']
    #allocation7 [shape = 's32[2]{0}', space=sflag, size = 0x8, scoped, tag = 'scoped memory for tpu_custom_call.1']
    #allocation8 [shape = 'u8[262144]{0}', space=vmem, size = 0x40000, scoped, tag = 'input window, operand 2']
    #allocation9 [shape = 'u8[262144]{0}', space=vmem, size = 0x40000, scoped, tag = 'input window, operand 5']
    #allocation10 [shape = 's32[2]{0}', space=sflag, size = 0x8, scoped, tag = 'scoped memory for tpu_custom_call.1']
    #allocation11 [shape = 'u8[262144]{0}', space=vmem, size = 0x40000, scoped, tag = 'output window, operand 0']
    %12 = vsyncpa [#allocation4], 0
    %s13 = scalar_lea.sflag [#allocation4], 1
    %14 = vsyncpa %s13, 0
    %15 = vsyncpa [#allocation7], 0
    %s16 = scalar_lea.sflag [#allocation7], 1
    %17 = vsyncpa %s16, 0
    %18 = vsyncpa [#allocation10], 0
    %s19 = scalar_lea.sflag [#allocation10], 1
    %20 = vsyncpa %s19, 0
    %21 = vsyncpa [#allocation5], 0
    %s22 = scalar_lea.sflag [#allocation5], 1
    %23 = vsyncpa %s22, 0
    loop: start=0, step=1, limit=6
    $region2: #{tpu_custom_call.1} parent=1 // loop_pre_header
      _
    $region3: #{tpu_custom_call.1} parent=1 // loop_header
      %s25 = sphi 0, %s29
      %p26 = scmp.ge.s32.totalorder %s25, 6
      %s32 = sphi 0, %s44
      %s33 = sphi 0, %s40
      %s34 = sphi 0, %s32
      %s35 = sphi 0, %s33
      %s36 = sphi 0, %s34
      %s37 = sphi 0, %s35
      %s47 = sphi 0, %s49
      %s50 = sphi 0, %s47
      %s51 = sphi 0, %s50
      %s67 = sphi 0, %s51
      %s73 = sphi 0, %s75
      %s76 = sphi 0, %s73
      %s77 = sphi 0, %s76
      %s93 = sphi 0, %s77
      %s99 = sphi 0, %s101
      %s102 = sphi 0, %s99
      %s103 = sphi 0, %s102
      %s119 = sphi 0, %s103
      %s125 = sphi 0, %s127
      %s128 = sphi 0, %s125
      %s129 = sphi 0, %s128
      %s145 = sphi 0, %s129
      %s151 = sphi 0, %s153
      %s154 = sphi 0, %s151
      %s155 = sphi 0, %s154
      %s171 = sphi 0, %s155
      %s177 = sphi 0, %s179
      %s180 = sphi 0, %s177
      %s181 = sphi 0, %s180
      %s197 = sphi 0, %s181
      %s201 = sphi 0, %s201
      %s203 = sphi 0, %s201
      %s204 = sphi 0, %s203
      %s218 = sphi 0, %s204
      %s224 = sphi 0, %s226
      %s227 = sphi 0, %s224
      %s228 = sphi 0, %s227
      %s244 = sphi 0, %s228
    $region4: #{tpu_custom_call.1} parent=1 // loop_header_branch
      %28 = sbr.rel (%p26) target = $region8
    $region5: #{tpu_custom_call.1} parent=1 // loop_body
      %s30 = ssub.s32 %s25, 1
      %s31 = ssub.s32 %s25, 2
      %s38 = sadd.s32 1, %s33
      %p39 = scmp.ge.s32.totalorder %s38, 2
      %s40 = scalar_select %p39, 0, %s38
      %s41 = sadd.s32 1, %s32
      %s42 = scalar_select %p39, %s41, %s32
      %p43 = scmp.ge.s32.totalorder %s42, 2
      %s44 = scalar_select %p43, 0, %s42
      %s45 = ssub.s32 %s32, %s44
      %p46 = scmp.eq.s32.totalorder %s45, 0
      %s48 = sadd.s32 %s47, 1
      %s49 = scalar_select %p46, %s47, %s48
      %p52 = pneg %p46
      %p53 = scmp.eq.s32.totalorder %s25, 3
      %p54 = por %p52, %p53
      %p55 = scmp.ne.s32.totalorder %s47, %s50
      %p56 = scmp.eq.s32.totalorder %s25, 0
      %p57 = por %p55, %p56
      %p58 = scmp.ne.s32.totalorder %s47, %s50
      %p59 = scmp.eq.s32.totalorder %s30, 3
      %p60 = por %p58, %p59
      %p61 = scmp.ne.s32.totalorder %s50, %s51
      %p62 = scmp.eq.s32.totalorder %s30, 0
      %p63 = por %p61, %p62
      %p64 = scmp.ne.s32.totalorder %s50, %s51
      %p65 = scmp.eq.s32.totalorder %s31, 3
      %p66 = por %p64, %p65
      %p68 = scmp.ne.s32.totalorder %s51, %s67
      %p69 = scmp.eq.s32.totalorder %s31, 0
      %p70 = por %p68, %p69
      %s71 = ssub.s32 %s33, %s40
      %p72 = scmp.eq.s32.totalorder %s71, 0
      %s74 = sadd.s32 %s73, 1
      %s75 = scalar_select %p72, %s73, %s74
      %p78 = pneg %p72
      %p79 = scmp.eq.s32.totalorder %s25, 3
      %p80 = por %p78, %p79
      %p81 = scmp.ne.s32.totalorder %s73, %s76
      %p82 = scmp.eq.s32.totalorder %s25, 0
      %p83 = por %p81, %p82
      %p84 = scmp.ne.s32.totalorder %s73, %s76
      %p85 = scmp.eq.s32.totalorder %s30, 3
      %p86 = por %p84, %p85
      %p87 = scmp.ne.s32.totalorder %s76, %s77
      %p88 = scmp.eq.s32.totalorder %s30, 0
      %p89 = por %p87, %p88
      %p90 = scmp.ne.s32.totalorder %s76, %s77
      %p91 = scmp.eq.s32.totalorder %s31, 3
      %p92 = por %p90, %p91
      %p94 = scmp.ne.s32.totalorder %s77, %s93
      %p95 = scmp.eq.s32.totalorder %s31, 0
      %p96 = por %p94, %p95
      %s97 = ssub.s32 %s33, %s40
      %p98 = scmp.eq.s32.totalorder %s97, 0
      %s100 = sadd.s32 %s99, 1
      %s101 = scalar_select %p98, %s99, %s100
      %p104 = pneg %p98
      %p105 = scmp.eq.s32.totalorder %s25, 3
      %p106 = por %p104, %p105
      %p107 = scmp.ne.s32.totalorder %s99, %s102
      %p108 = scmp.eq.s32.totalorder %s25, 0
      %p109 = por %p107, %p108
      %p110 = scmp.ne.s32.totalorder %s99, %s102
      %p111 = scmp.eq.s32.totalorder %s30, 3
      %p112 = por %p110, %p111
      %p113 = scmp.ne.s32.totalorder %s102, %s103
      %p114 = scmp.eq.s32.totalorder %s30, 0
      %p115 = por %p113, %p114
      %p116 = scmp.ne.s32.totalorder %s102, %s103
      %p117 = scmp.eq.s32.totalorder %s31, 3
      %p118 = por %p116, %p117
      %p120 = scmp.ne.s32.totalorder %s103, %s119
      %p121 = scmp.eq.s32.totalorder %s31, 0
      %p122 = por %p120, %p121
      %s123 = ssub.s32 %s33, %s40
      %p124 = scmp.eq.s32.totalorder %s123, 0
      %s126 = sadd.s32 %s125, 1
      %s127 = scalar_select %p124, %s125, %s126
      %p130 = pneg %p124
      %p131 = scmp.eq.s32.totalorder %s25, 3
      %p132 = por %p130, %p131
      %p133 = scmp.ne.s32.totalorder %s125, %s128
      %p134 = scmp.eq.s32.totalorder %s25, 0
      %p135 = por %p133, %p134
      %p136 = scmp.ne.s32.totalorder %s125, %s128
      %p137 = scmp.eq.s32.totalorder %s30, 3
      %p138 = por %p136, %p137
      %p139 = scmp.ne.s32.totalorder %s128, %s129
      %p140 = scmp.eq.s32.totalorder %s30, 0
      %p141 = por %p139, %p140
      %p142 = scmp.ne.s32.totalorder %s128, %s129
      %p143 = scmp.eq.s32.totalorder %s31, 3
      %p144 = por %p142, %p143
      %p146 = scmp.ne.s32.totalorder %s129, %s145
      %p147 = scmp.eq.s32.totalorder %s31, 0
      %p148 = por %p146, %p147
      %s149 = ssub.s32 %s33, %s40
      %p150 = scmp.eq.s32.totalorder %s149, 0
      %s152 = sadd.s32 %s151, 1
      %s153 = scalar_select %p150, %s151, %s152
      %p156 = pneg %p150
      %p157 = scmp.eq.s32.totalorder %s25, 3
      %p158 = por %p156, %p157
      %p159 = scmp.ne.s32.totalorder %s151, %s154
      %p160 = scmp.eq.s32.totalorder %s25, 0
      %p161 = por %p159, %p160
      %p162 = scmp.ne.s32.totalorder %s151, %s154
      %p163 = scmp.eq.s32.totalorder %s30, 3
      %p164 = por %p162, %p163
      %p165 = scmp.ne.s32.totalorder %s154, %s155
      %p166 = scmp.eq.s32.totalorder %s30, 0
      %p167 = por %p165, %p166
      %p168 = scmp.ne.s32.totalorder %s154, %s155
      %p169 = scmp.eq.s32.totalorder %s31, 3
      %p170 = por %p168, %p169
      %p172 = scmp.ne.s32.totalorder %s155, %s171
      %p173 = scmp.eq.s32.totalorder %s31, 0
      %p174 = por %p172, %p173
      %s175 = ssub.s32 %s33, %s40
      %p176 = scmp.eq.s32.totalorder %s175, 0
      %s178 = sadd.s32 %s177, 1
      %s179 = scalar_select %p176, %s177, %s178
      %p182 = pneg %p176
      %p183 = scmp.eq.s32.totalorder %s25, 3
      %p184 = por %p182, %p183
      %p185 = scmp.ne.s32.totalorder %s177, %s180
      %p186 = scmp.eq.s32.totalorder %s25, 0
      %p187 = por %p185, %p186
      %p188 = scmp.ne.s32.totalorder %s177, %s180
      %p189 = scmp.eq.s32.totalorder %s30, 3
      %p190 = por %p188, %p189
      %p191 = scmp.ne.s32.totalorder %s180, %s181
      %p192 = scmp.eq.s32.totalorder %s30, 0
      %p193 = por %p191, %p192
      %p194 = scmp.ne.s32.totalorder %s180, %s181
      %p195 = scmp.eq.s32.totalorder %s31, 3
      %p196 = por %p194, %p195
      %p198 = scmp.ne.s32.totalorder %s181, %s197
      %p199 = scmp.eq.s32.totalorder %s31, 0
      %p200 = por %p198, %p199
      %s202 = sadd.s32 %s201, 1
      %p205 = scmp.eq.s32.totalorder %s25, 3
      %p206 = scmp.ne.s32.totalorder %s201, %s203
      %p207 = scmp.eq.s32.totalorder %s25, 0
      %p208 = por %p206, %p207
      %p209 = scmp.ne.s32.totalorder %s201, %s203
      %p210 = scmp.eq.s32.totalorder %s30, 3
      %p211 = por %p209, %p210
      %p212 = scmp.ne.s32.totalorder %s203, %s204
      %p213 = scmp.eq.s32.totalorder %s30, 0
      %p214 = por %p212, %p213
      %p215 = scmp.ne.s32.totalorder %s203, %s204
      %p216 = scmp.eq.s32.totalorder %s31, 3
      %p217 = por %p215, %p216
      %p219 = scmp.ne.s32.totalorder %s204, %s218
      %p220 = scmp.eq.s32.totalorder %s31, 0
      %p221 = por %p219, %p220
      %s222 = ssub.s32 %s32, %s44
      %p223 = scmp.eq.s32.totalorder %s222, 0
      %s225 = sadd.s32 %s224, 1
      %s226 = scalar_select %p223, %s224, %s225
      %p229 = pneg %p223
      %p230 = scmp.eq.s32.totalorder %s25, 3
      %p231 = por %p229, %p230
      %p232 = scmp.ne.s32.totalorder %s224, %s227
      %p233 = scmp.eq.s32.totalorder %s25, 0
      %p234 = por %p232, %p233
      %p235 = scmp.ne.s32.totalorder %s224, %s227
      %p236 = scmp.eq.s32.totalorder %s30, 3
      %p237 = por %p235, %p236
      %p238 = scmp.ne.s32.totalorder %s227, %s228
      %p239 = scmp.eq.s32.totalorder %s30, 0
      %p240 = por %p238, %p239
      %p241 = scmp.ne.s32.totalorder %s227, %s228
      %p242 = scmp.eq.s32.totalorder %s31, 3
      %p243 = por %p241, %p242
      %p245 = scmp.ne.s32.totalorder %s228, %s244
      %p246 = scmp.eq.s32.totalorder %s31, 0
      %p247 = por %p245, %p246
      %p248 = scmp.le.s32.totalorder 1, %s25
      %p249 = scmp.lt.s32.totalorder %s25, 5
      %p250 = pnand %p248, %p249
      %p251 = pneg %p250
      // Predicated region
      $region9: #{tpu_custom_call.1} parent=5 // pred_check
        _
      $region10: #{tpu_custom_call.1} parent=5 // pred_check_branch
        %253 = sbr.rel (%p250) target = $region12
      $region11: #{tpu_custom_call.1} parent=5 // pred_region
        %s254 = ssub.s32 %s25, 1
        // Predicated region
        $region13: #{tpu_custom_call.1} parent=11 // pred_check
          %p255 = pneg %p214
        $region14: #{tpu_custom_call.1} parent=11 // pred_check_branch
          %257 = sbr.rel (%p255) target = $region16
        $region15: #{tpu_custom_call.1} parent=11 // pred_region
          _
        $region16: #{tpu_custom_call.1} parent=11 // pred_fallthru
          _
      $region12: #{tpu_custom_call.1} parent=5 // pred_fallthru
        _
      %p258 = scmp.lt.s32.totalorder %s25, 4
      // Predicated region
      $region17: #{tpu_custom_call.1} parent=5 // pred_check
        %p259 = pneg %p258
      $region18: #{tpu_custom_call.1} parent=5 // pred_check_branch
        %261 = sbr.rel (%p259) target = $region20
      $region19: #{tpu_custom_call.1} parent=5 // pred_region
        // Predicated region
        $region21: #{tpu_custom_call.1} parent=19 // pred_check
          %p262 = pneg %p57
        $region22: #{tpu_custom_call.1} parent=19 // pred_check_branch
          %264 = sbr.rel (%p262) target = $region24
        $region23: #{tpu_custom_call.1} parent=19 // pred_region
          %s265 = sand.u32 %s47, 1
          %s266 = scalar_lea.sflag [#allocation4], %s265
          %s267 = sand.u32 %s47, 1
          %s268 = smul.addr %s267, 256
          %s269 = scalar_lea.vmem [#allocation3], %s268
          %s270 = smul.u32 32, %s32
          %s272 = ssub.s32 4096, 4096
          %273 = vsyncadd %s266, %s272
          %s274 = smul.addr %s270, 128
          %s275 = scalar_lea.hbm %s0, %s274
          %s276 = sshll.u32 %s269, 4
          %s277 = int_to_ptr.vmem [resolvable:$true] %s276
          %282 = dma.hbm_to_vmem [thread:$0]  %s275, 4096, %s277, %s266, 128, 128, 8
        $region24: #{tpu_custom_call.1} parent=19 // pred_fallthru
          _
        // Predicated region
        $region25: #{tpu_custom_call.1} parent=19 // pred_check
          %p283 = pneg %p83
        $region26: #{tpu_custom_call.1} parent=19 // pred_check_branch
          %285 = sbr.rel (%p283) target = $region28
        $region27: #{tpu_custom_call.1} parent=19 // pred_region
          %s286 = sand.u32 %s25, 1
          %s287 = scalar_lea.sflag [#allocation7], %s286
          %s288 = sand.u32 %s73, 1
          %s289 = smul.addr %s288, 256
          %s290 = scalar_lea.vmem [#allocation6], %s289
          %s291 = smul.u32 2, %s33
          %s293 = ssub.s32 4096, 4096
          %294 = vsyncadd %s287, %s293
          %s295 = smul.addr %s291, 128
          %s296 = scalar_lea.hbm %s1, %s295
          %s297 = sshll.u32 %s290, 4
          %s298 = int_to_ptr.vmem [resolvable:$true] %s297
          %303 = dma.hbm_to_vmem [thread:$0]  %s296, 4096, %s298, %s287, 512, 256, 16
        $region28: #{tpu_custom_call.1} parent=19 // pred_fallthru
          _
        // Predicated region
        $region29: #{tpu_custom_call.1} parent=19 // pred_check
          %p304 = pneg %p109
        $region30: #{tpu_custom_call.1} parent=19 // pred_check_branch
          %306 = sbr.rel (%p304) target = $region32
        $region31: #{tpu_custom_call.1} parent=19 // pred_region
          %s307 = sand.u32 %s25, 1
          %s308 = scalar_lea.sflag [#allocation7], %s307
          %s309 = sand.u32 %s99, 1
          %s310 = smul.addr %s309, 256
          %s311 = scalar_lea.vmem [#allocation8], %s310
          %s312 = smul.u32 2, %s33
          %s314 = ssub.s32 4096, 4096
          %315 = vsyncadd %s308, %s314
          %s316 = smul.addr %s312, 128
          %s317 = scalar_lea.hbm %s2, %s316
          %s318 = sshll.u32 %s311, 4
          %s319 = int_to_ptr.vmem [resolvable:$true] %s318
          %324 = dma.hbm_to_vmem [thread:$0]  %s317, 4096, %s319, %s308, 512, 256, 16
        $region32: #{tpu_custom_call.1} parent=19 // pred_fallthru
          _
        // Predicated region
        $region33: #{tpu_custom_call.1} parent=19 // pred_check
          %p325 = pneg %p135
        $region34: #{tpu_custom_call.1} parent=19 // pred_check_branch
          %327 = sbr.rel (%p325) target = $region36
        $region35: #{tpu_custom_call.1} parent=19 // pred_region
          %s328 = smul.u32 2, %s33
          %p329 = scmp.lt.s32.totalorder %s328, 3
          %s330 = scalar_select %p329, %s328, 3
          %s331 = scalar_lea.vmem %s3, %s330
          %s332 = smul.u32 2, %s33
        $region36: #{tpu_custom_call.1} parent=19 // pred_fallthru
          _
        // Predicated region
        $region37: #{tpu_custom_call.1} parent=19 // pred_check
          %p333 = pneg %p161
        $region38: #{tpu_custom_call.1} parent=19 // pred_check_branch
          %335 = sbr.rel (%p333) target = $region40
        $region39: #{tpu_custom_call.1} parent=19 // pred_region
          %s336 = smul.u32 2, %s33
          %p337 = scmp.lt.s32.totalorder %s336, 3
          %s338 = scalar_select %p337, %s336, 3
          %s339 = scalar_lea.vmem %s4, %s338
          %s340 = smul.u32 2, %s33
        $region40: #{tpu_custom_call.1} parent=19 // pred_fallthru
          _
        // Predicated region
        $region41: #{tpu_custom_call.1} parent=19 // pred_check
          %p341 = pneg %p187
        $region42: #{tpu_custom_call.1} parent=19 // pred_check_branch
          %343 = sbr.rel (%p341) target = $region44
        $region43: #{tpu_custom_call.1} parent=19 // pred_region
          %s344 = sand.u32 %s177, 1
          %s345 = scalar_lea.sflag [#allocation10], %s344
          %s346 = sand.u32 %s177, 1
          %s347 = smul.addr %s346, 256
          %s348 = scalar_lea.vmem [#allocation9], %s347
          %s349 = smul.u32 32, %s33
          %s351 = ssub.s32 4096, 4096
          %352 = vsyncadd %s345, %s351
          %s353 = smul.addr %s349, 128
          %s354 = scalar_lea.hbm %s5, %s353
          %s355 = sshll.u32 %s348, 4
          %s356 = int_to_ptr.vmem [resolvable:$true] %s355
          %361 = dma.hbm_to_vmem [thread:$0]  %s354, 4096, %s356, %s345, 128, 128, 8
        $region44: #{tpu_custom_call.1} parent=19 // pred_fallthru
          _
      $region20: #{tpu_custom_call.1} parent=5 // pred_fallthru
        _
      %p362 = scmp.le.s32.totalorder 1, %s25
      %p363 = scmp.lt.s32.totalorder %s25, 5
      %p364 = pnand %p362, %p363
      %p365 = pneg %p364
      // Predicated region
      $region45: #{tpu_custom_call.1} parent=5 // pred_check
        _
      $region46: #{tpu_custom_call.1} parent=5 // pred_check_branch
        %367 = sbr.rel (%p364) target = $region48
      $region47: #{tpu_custom_call.1} parent=5 // pred_region
        %s368 = ssub.s32 %s25, 1
        %s369 = sand.u32 %s50, 1
        %s370 = scalar_lea.sflag [#allocation4], %s369
        %s371 = sand.u32 %s50, 1
        %s372 = smul.addr %s371, 256
        %s373 = scalar_lea.vmem [#allocation3], %s372
        // Predicated region
        $region49: #{tpu_custom_call.1} parent=47 // pred_check
          %p374 = pneg %p63
        $region50: #{tpu_custom_call.1} parent=47 // pred_check_branch
          %376 = sbr.rel (%p374) target = $region52
        $region51: #{tpu_custom_call.1} parent=47 // pred_region
          %377 = dma.done %s370, 4096
        $region52: #{tpu_custom_call.1} parent=47 // pred_fallthru
          _
        %s378 = sand.u32 %s30, 1
        %s379 = scalar_lea.sflag [#allocation7], %s378
        %s380 = sand.u32 %s76, 1
        %s381 = smul.addr %s380, 256
        %s382 = scalar_lea.vmem [#allocation6], %s381
        // Predicated region
        $region53: #{tpu_custom_call.1} parent=47 // pred_check
          %p383 = pneg %p89
        $region54: #{tpu_custom_call.1} parent=47 // pred_check_branch
          %385 = sbr.rel (%p383) target = $region56
        $region55: #{tpu_custom_call.1} parent=47 // pred_region
          %386 = dma.done %s379, 4096
        $region56: #{tpu_custom_call.1} parent=47 // pred_fallthru
          _
        %s387 = sand.u32 %s30, 1
        %s388 = scalar_lea.sflag [#allocation7], %s387
        %s389 = sand.u32 %s102, 1
        %s390 = smul.addr %s389, 256
        %s391 = scalar_lea.vmem [#allocation8], %s390
        // Predicated region
        $region57: #{tpu_custom_call.1} parent=47 // pred_check
          %p392 = pneg %p115
        $region58: #{tpu_custom_call.1} parent=47 // pred_check_branch
          %394 = sbr.rel (%p392) target = $region60
        $region59: #{tpu_custom_call.1} parent=47 // pred_region
          %395 = dma.done %s388, 4096
        $region60: #{tpu_custom_call.1} parent=47 // pred_fallthru
          _
        %s396 = sand.u32 %s180, 1
        %s397 = scalar_lea.sflag [#allocation10], %s396
        %s398 = sand.u32 %s180, 1
        %s399 = smul.addr %s398, 256
        %s400 = scalar_lea.vmem [#allocation9], %s399
        // Predicated region
        $region61: #{tpu_custom_call.1} parent=47 // pred_check
          %p401 = pneg %p193
        $region62: #{tpu_custom_call.1} parent=47 // pred_check_branch
          %403 = sbr.rel (%p401) target = $region64
        $region63: #{tpu_custom_call.1} parent=47 // pred_region
          %404 = dma.done %s397, 4096
        $region64: #{tpu_custom_call.1} parent=47 // pred_fallthru
          _
        %s405 = sand.u32 %s50, 1
        %s406 = scalar_lea.sflag [#allocation4], %s405
        %s407 = sand.u32 %s50, 1
        %s408 = smul.addr %s407, 256
        %s409 = scalar_lea.vmem [#allocation3], %s408
        %p410 = pneg %p63
        %p411 = pneg %p60
        %s412 = sand.u32 %s30, 1
        %s413 = scalar_lea.sflag [#allocation7], %s412
        %s414 = sand.u32 %s76, 1
        %s415 = smul.addr %s414, 256
        %s416 = scalar_lea.vmem [#allocation6], %s415
        %p417 = pneg %p89
        %p418 = pneg %p86
        %s419 = sand.u32 %s30, 1
        %s420 = scalar_lea.sflag [#allocation7], %s419
        %s421 = sand.u32 %s102, 1
        %s422 = smul.addr %s421, 256
        %s423 = scalar_lea.vmem [#allocation8], %s422
        %p424 = pneg %p115
        %p425 = pneg %p112
        %s426 = smul.u32 2, %s35
        %p427 = scmp.lt.s32.totalorder %s426, 3
        %s428 = scalar_select %p427, %s426, 3
        %s429 = scalar_lea.vmem %s3, %s428
        %p430 = pneg %p141
        %p431 = pneg %p138
        %s432 = smul.u32 2, %s35
        %p433 = scmp.lt.s32.totalorder %s432, 3
        %s434 = scalar_select %p433, %s432, 3
        %s435 = scalar_lea.vmem %s4, %s434
        %p436 = pneg %p167
        %p437 = pneg %p164
        %s438 = sand.u32 %s180, 1
        %s439 = scalar_lea.sflag [#allocation10], %s438
        %s440 = sand.u32 %s180, 1
        %s441 = smul.addr %s440, 256
        %s442 = scalar_lea.vmem [#allocation9], %s441
        %p443 = pneg %p193
        %p444 = pneg %p190
        %p445 = pneg %p214
        %p446 = pneg %p211
        %p447 = pneg %p240
        %p448 = pneg %p237
        %s449 = sand.u32 %s227, 1
        %s450 = scalar_lea.sflag [#allocation5], %s449
        %s451 = sand.u32 %s227, 1
        %s452 = smul.addr %s451, 256
        %s453 = scalar_lea.vmem [#allocation11], %s452
        %s454 = smul.u32 32, %s34
        %s455 = smul.u32 2, %s35
        %s456 = smul.u32 2, %s35
        %s457 = smul.u32 2, %s35
        %p458 = scmp.lt.s32.totalorder %s457, 3
        %s459 = scalar_select %p458, %s457, 3
        %s460 = scalar_lea.vmem %s3, %s459
        %s461 = smul.u32 2, %s35
        %s462 = smul.u32 2, %s35
        %p463 = scmp.lt.s32.totalorder %s462, 3
        %s464 = scalar_select %p463, %s462, 3
        %s465 = scalar_lea.vmem %s4, %s464
        %s466 = smul.u32 2, %s35
        %s467 = smul.u32 32, %s35
        %s468 = smul.u32 32, %s34
        %p469 = scmp.eq.s32.totalorder %s35, 0
        // Predicated region
        $region65: #{tpu_custom_call.1} parent=47 // pred_check
          %p470 = pneg %p469
        $region66: #{tpu_custom_call.1} parent=47 // pred_check_branch
          %472 = sbr.rel (%p470) target = $region68
        $region67: #{tpu_custom_call.1} parent=47 // pred_region
          %473 = vst [vmem:[#allocation2] sm:$0xff] 0.0
          %474 = vst [vmem:[#allocation2 + $0x8] sm:$0xff] 0.0
          %475 = vst [vmem:[#allocation2 + $0x10] sm:$0xff] 0.0
          %476 = vst [vmem:[#allocation2 + $0x18] sm:$0xff] 0.0
          %477 = vst [vmem:[#allocation2 + $0x20] sm:$0xff] 0.0
          %478 = vst [vmem:[#allocation2 + $0x28] sm:$0xff] 0.0
          %479 = vst [vmem:[#allocation2 + $0x30] sm:$0xff] 0.0
          %480 = vst [vmem:[#allocation2 + $0x38] sm:$0xff] 0.0
          %481 = vst [vmem:[#allocation2 + $0x40] sm:$0xff] 0.0
          %482 = vst [vmem:[#allocation2 + $0x48] sm:$0xff] 0.0
          %483 = vst [vmem:[#allocation2 + $0x50] sm:$0xff] 0.0
          %484 = vst [vmem:[#allocation2 + $0x58] sm:$0xff] 0.0
          %485 = vst [vmem:[#allocation2 + $0x60] sm:$0xff] 0.0
          %486 = vst [vmem:[#allocation2 + $0x68] sm:$0xff] 0.0
          %487 = vst [vmem:[#allocation2 + $0x70] sm:$0xff] 0.0
          %488 = vst [vmem:[#allocation2 + $0x78] sm:$0xff] 0.0
          %489 = vst [vmem:[#allocation2 + $0x80] sm:$0xff] 0.0
          %490 = vst [vmem:[#allocation2 + $0x88] sm:$0xff] 0.0
          %491 = vst [vmem:[#allocation2 + $0x90] sm:$0xff] 0.0
          %492 = vst [vmem:[#allocation2 + $0x98] sm:$0xff] 0.0
          %493 = vst [vmem:[#allocation2 + $0xa0] sm:$0xff] 0.0
          %494 = vst [vmem:[#allocation2 + $0xa8] sm:$0xff] 0.0
          %495 = vst [vmem:[#allocation2 + $0xb0] sm:$0xff] 0.0
          %496 = vst [vmem:[#allocation2 + $0xb8] sm:$0xff] 0.0
          %497 = vst [vmem:[#allocation2 + $0xc0] sm:$0xff] 0.0
          %498 = vst [vmem:[#allocation2 + $0xc8] sm:$0xff] 0.0
          %499 = vst [vmem:[#allocation2 + $0xd0] sm:$0xff] 0.0
          %500 = vst [vmem:[#allocation2 + $0xd8] sm:$0xff] 0.0
          %501 = vst [vmem:[#allocation2 + $0xe0] sm:$0xff] 0.0
          %502 = vst [vmem:[#allocation2 + $0xe8] sm:$0xff] 0.0
          %503 = vst [vmem:[#allocation2 + $0xf0] sm:$0xff] 0.0
          %504 = vst [vmem:[#allocation2 + $0xf8] sm:$0xff] 0.0
        $region68: #{tpu_custom_call.1} parent=47 // pred_fallthru
          _
        %v505 = vld [vmem:[%s373] sm:$0xff]
        %v506 = vld [vmem:[%s373 + $0x8] sm:$0xff]
        %v507 = vld [vmem:[%s373 + $0x10] sm:$0xff]
        %v508 = vld [vmem:[%s373 + $0x18] sm:$0xff]
        %v509 = vld [vmem:[%s373 + $0x20] sm:$0xff]
        %v510 = vld [vmem:[%s373 + $0x28] sm:$0xff]
        %v511 = vld [vmem:[%s373 + $0x30] sm:$0xff]
        %v512 = vld [vmem:[%s373 + $0x38] sm:$0xff]
        %v513 = vld [vmem:[%s373 + $0x40] sm:$0xff]
        %v514 = vld [vmem:[%s373 + $0x48] sm:$0xff]
        %v515 = vld [vmem:[%s373 + $0x50] sm:$0xff]
        %v516 = vld [vmem:[%s373 + $0x58] sm:$0xff]
        %v517 = vld [vmem:[%s373 + $0x60] sm:$0xff]
        %v518 = vld [vmem:[%s373 + $0x68] sm:$0xff]
        %v519 = vld [vmem:[%s373 + $0x70] sm:$0xff]
        %v520 = vld [vmem:[%s373 + $0x78] sm:$0xff]
        %v521 = vld [vmem:[%s373 + $0x80] sm:$0xff]
        %v522 = vld [vmem:[%s373 + $0x88] sm:$0xff]
        %v523 = vld [vmem:[%s373 + $0x90] sm:$0xff]
        %v524 = vld [vmem:[%s373 + $0x98] sm:$0xff]
        %v525 = vld [vmem:[%s373 + $0xa0] sm:$0xff]
        %v526 = vld [vmem:[%s373 + $0xa8] sm:$0xff]
        %v527 = vld [vmem:[%s373 + $0xb0] sm:$0xff]
        %v528 = vld [vmem:[%s373 + $0xb8] sm:$0xff]
        %v529 = vld [vmem:[%s373 + $0xc0] sm:$0xff]
        %v530 = vld [vmem:[%s373 + $0xc8] sm:$0xff]
        %v531 = vld [vmem:[%s373 + $0xd0] sm:$0xff]
        %v532 = vld [vmem:[%s373 + $0xd8] sm:$0xff]
        %v533 = vld [vmem:[%s373 + $0xe0] sm:$0xff]
        %v534 = vld [vmem:[%s373 + $0xe8] sm:$0xff]
        %v535 = vld [vmem:[%s373 + $0xf0] sm:$0xff]
        %v536 = vld [vmem:[%s373 + $0xf8] sm:$0xff]
        %v537 = vld [vmem:[%s382] sm:$0xff]
        %v538 = vld [vmem:[%s382 + $0x8] sm:$0xff]
        %v539 = vld [vmem:[%s382 + $0x10] sm:$0xff]
        %v540 = vld [vmem:[%s382 + $0x18] sm:$0xff]
        %v541 = vld [vmem:[%s382 + $0x20] sm:$0xff]
        %v542 = vld [vmem:[%s382 + $0x28] sm:$0xff]
        %v543 = vld [vmem:[%s382 + $0x30] sm:$0xff]
        %v544 = vld [vmem:[%s382 + $0x38] sm:$0xff]
        %v545 = vld [vmem:[%s382 + $0x40] sm:$0xff]
        %v546 = vld [vmem:[%s382 + $0x48] sm:$0xff]
        %v547 = vld [vmem:[%s382 + $0x50] sm:$0xff]
        %v548 = vld [vmem:[%s382 + $0x58] sm:$0xff]
        %v549 = vld [vmem:[%s382 + $0x60] sm:$0xff]
        %v550 = vld [vmem:[%s382 + $0x68] sm:$0xff]
        %v551 = vld [vmem:[%s382 + $0x70] sm:$0xff]
        %v552 = vld [vmem:[%s382 + $0x78] sm:$0xff]
        %v553 = vld [vmem:[%s382 + $0x80] sm:$0xff]
        %v554 = vld [vmem:[%s382 + $0x88] sm:$0xff]
        %v555 = vld [vmem:[%s382 + $0x90] sm:$0xff]
        %v556 = vld [vmem:[%s382 + $0x98] sm:$0xff]
        %v557 = vld [vmem:[%s382 + $0xa0] sm:$0xff]
        %v558 = vld [vmem:[%s382 + $0xa8] sm:$0xff]
        %v559 = vld [vmem:[%s382 + $0xb0] sm:$0xff]
        %v560 = vld [vmem:[%s382 + $0xb8] sm:$0xff]
        %v561 = vld [vmem:[%s382 + $0xc0] sm:$0xff]
        %v562 = vld [vmem:[%s382 + $0xc8] sm:$0xff]
        %v563 = vld [vmem:[%s382 + $0xd0] sm:$0xff]
        %v564 = vld [vmem:[%s382 + $0xd8] sm:$0xff]
        %v565 = vld [vmem:[%s382 + $0xe0] sm:$0xff]
        %v566 = vld [vmem:[%s382 + $0xe8] sm:$0xff]
        %v567 = vld [vmem:[%s382 + $0xf0] sm:$0xff]
        %v568 = vld [vmem:[%s382 + $0xf8] sm:$0xff]
        %v569 = vld [vmem:[%s460] sm:$0x3]
        %v571 = vlaneseq
        %v572 = vshrl.u32 %v571, 7
        %v573 = vsub.s32 0, %v572
        %v574 = vrot.slane %v569, %v573
        %v575 = vlaneseq
        %v576 = vshrl.u32 %v575, 7
        %v577 = vsub.s32 1, %v576
        %v578 = vrot.slane %v569, %v577
        %581 = vmatprep.subr.mxu0 %v538
        %582 = vmatpush1.msra.mxu0 %v537
        %583 = vmatprep.subr.mxu0 %v540
        %584 = vmatpush1.msra.mxu0 %v539
        %585 = vmatprep.subr.mxu0 %v542
        %586 = vmatpush1.msra.mxu0 %v541
        %587 = vmatprep.subr.mxu0 %v544
        %588 = vmatpush1.msra.mxu0 %v543
        %589 = vmatprep.subr.mxu0 %v546
        %590 = vmatpush1.msra.mxu0 %v545
        %591 = vmatprep.subr.mxu0 %v548
        %592 = vmatpush1.msra.mxu0 %v547
        %593 = vmatprep.subr.mxu0 %v550
        %594 = vmatpush1.msra.mxu0 %v549
        %595 = vmatprep.subr.mxu0 %v552
        %596 = vmatpush1.msra.mxu0 %v551
        %597 = vmatprep.subr.mxu0 %v554
        %598 = vmatpush1.msra.mxu0 %v553
        %599 = vmatprep.subr.mxu0 %v556
        %600 = vmatpush1.msra.mxu0 %v555
        %601 = vmatprep.subr.mxu0 %v558
        %602 = vmatpush1.msra.mxu0 %v557
        %603 = vmatprep.subr.mxu0 %v560
        %604 = vmatpush1.msra.mxu0 %v559
        %605 = vmatprep.subr.mxu0 %v562
        %606 = vmatpush1.msra.mxu0 %v561
        %607 = vmatprep.subr.mxu0 %v564
        %608 = vmatpush1.msra.mxu0 %v563
        %609 = vmatprep.subr.mxu0 %v566
        %610 = vmatpush1.msra.mxu0 %v565
        %611 = vmatprep.subr.mxu0 %v568
        %612 = vmatpush1.msra.mxu0 %v567
        %613 = vmatprep.subr.mxu0 0.0
        %614 = vmatpush1.msra.mxu0 0.0
        %615 = vmatprep.subr.mxu0 0.0
        %616 = vmatpush1.msra.mxu0 0.0
        %617 = vmatprep.subr.mxu0 0.0
        %618 = vmatpush1.msra.mxu0 0.0
        %619 = vmatprep.subr.mxu0 0.0
        %620 = vmatpush1.msra.mxu0 0.0
        %621 = vmatprep.subr.mxu0 0.0
        %622 = vmatpush1.msra.mxu0 0.0
        %623 = vmatprep.subr.mxu0 0.0
        %624 = vmatpush1.msra.mxu0 0.0
        %625 = vmatprep.subr.mxu0 0.0
        %626 = vmatpush1.msra.mxu0 0.0
        %627 = vmatprep.subr.mxu0 0.0
        %628 = vmatpush1.msra.mxu0 0.0
        %629 = vmatprep.subr.mxu0 0.0
        %630 = vmatpush1.msra.mxu0 0.0
        %631 = vmatprep.subr.mxu0 0.0
        %632 = vmatpush1.msra.mxu0 0.0
        %633 = vmatprep.subr.mxu0 0.0
        %634 = vmatpush1.msra.mxu0 0.0
        %635 = vmatprep.subr.mxu0 0.0
        %636 = vmatpush1.msra.mxu0 0.0
        %637 = vmatprep.subr.mxu0 0.0
        %638 = vmatpush1.msra.mxu0 0.0
        %639 = vmatprep.subr.mxu0 0.0
        %640 = vmatpush1.msra.mxu0 0.0
        %641 = vmatprep.subr.mxu0 0.0
        %642 = vmatpush1.msra.mxu0 0.0
        %643 = vmatprep.subr.mxu0 0.0
        %644 = vmatpush1.msra.mxu0 0.0
        %645 = vmatprep.mubr.f32.mxu0 0.0
        %646 = vmatmul.mubr.f32.gmra.mrb[0].mxu0 %v505
        %v647 = vpop.f32.mrb[0].mxu0
        %v648 = vadd.f32 %v574, %v647
        %v649 = vpop.f32.mrb[0].mxu0
        %v650 = vadd.f32 %v578, %v649
        %651 = vmatprep.mubr.f32.mxu0 0.0
        %652 = vmatmul.mubr.f32.gmra.mrb[0].mxu0 %v506
        %v653 = vpop.f32.mrb[0].mxu0
        %v654 = vadd.f32 %v574, %v653
        %v655 = vpop.f32.mrb[0].mxu0
        %v656 = vadd.f32 %v578, %v655
        %657 = vmatprep.mubr.f32.mxu0 0.0
        %658 = vmatmul.mubr.f32.gmra.mrb[0].mxu0 %v507
        %v659 = vpop.f32.mrb[0].mxu0
        %v660 = vadd.f32 %v574, %v659
        %v661 = vpop.f32.mrb[0].mxu0
        %v662 = vadd.f32 %v578, %v661
        %663 = vmatprep.mubr.f32.mxu0 0.0
        %664 = vmatmul.mubr.f32.gmra.mrb[0].mxu0 %v508
        %v665 = vpop.f32.mrb[0].mxu0
        %v666 = vadd.f32 %v574, %v665
        %v667 = vpop.f32.mrb[0].mxu0
        %v668 = vadd.f32 %v578, %v667
        %669 = vmatprep.mubr.f32.mxu0 0.0
        %670 = vmatmul.mubr.f32.gmra.mrb[0].mxu0 %v509
        %v671 = vpop.f32.mrb[0].mxu0
        %v672 = vadd.f32 %v574, %v671
        %v673 = vpop.f32.mrb[0].mxu0
        %v674 = vadd.f32 %v578, %v673
        %675 = vmatprep.mubr.f32.mxu0 0.0
        %676 = vmatmul.mubr.f32.gmra.mrb[0].mxu0 %v510
        %v677 = vpop.f32.mrb[0].mxu0
        %v678 = vadd.f32 %v574, %v677
        %v679 = vpop.f32.mrb[0].mxu0
        %v680 = vadd.f32 %v578, %v679
        %681 = vmatprep.mubr.f32.mxu0 0.0
        %682 = vmatmul.mubr.f32.gmra.mrb[0].mxu0 %v511
        %v683 = vpop.f32.mrb[0].mxu0
        %v684 = vadd.f32 %v574, %v683
        %v685 = vpop.f32.mrb[0].mxu0
        %v686 = vadd.f32 %v578, %v685
        %687 = vmatprep.mubr.f32.mxu0 0.0
        %688 = vmatmul.mubr.f32.gmra.mrb[0].mxu0 %v512
        %v689 = vpop.f32.mrb[0].mxu0
        %v690 = vadd.f32 %v574, %v689
        %v691 = vpop.f32.mrb[0].mxu0
        %v692 = vadd.f32 %v578, %v691
        %693 = vmatprep.mubr.f32.mxu0 0.0
        %694 = vmatmul.mubr.f32.gmra.mrb[0].mxu0 %v513
        %v695 = vpop.f32.mrb[0].mxu0
        %v696 = vadd.f32 %v574, %v695
        %v697 = vpop.f32.mrb[0].mxu0
        %v698 = vadd.f32 %v578, %v697
        %699 = vmatprep.mubr.f32.mxu0 0.0
        %700 = vmatmul.mubr.f32.gmra.mrb[0].mxu0 %v514
        %v701 = vpop.f32.mrb[0].mxu0
        %v702 = vadd.f32 %v574, %v701
        %v703 = vpop.f32.mrb[0].mxu0
        %v704 = vadd.f32 %v578, %v703
        %705 = vmatprep.mubr.f32.mxu0 0.0
        %706 = vmatmul.mubr.f32.gmra.mrb[0].mxu0 %v515
        %v707 = vpop.f32.mrb[0].mxu0
        %v708 = vadd.f32 %v574, %v707
        %v709 = vpop.f32.mrb[0].mxu0
        %v710 = vadd.f32 %v578, %v709
        %711 = vmatprep.mubr.f32.mxu0 0.0
        %712 = vmatmul.mubr.f32.gmra.mrb[0].mxu0 %v516
        %v713 = vpop.f32.mrb[0].mxu0
        %v714 = vadd.f32 %v574, %v713
        %v715 = vpop.f32.mrb[0].mxu0
        %v716 = vadd.f32 %v578, %v715
        %717 = vmatprep.mubr.f32.mxu0 0.0
        %718 = vmatmul.mubr.f32.gmra.mrb[0].mxu0 %v517
        %v719 = vpop.f32.mrb[0].mxu0
        %v720 = vadd.f32 %v574, %v719
        %v721 = vpop.f32.mrb[0].mxu0
        %v722 = vadd.f32 %v578, %v721
        %723 = vmatprep.mubr.f32.mxu0 0.0
        %724 = vmatmul.mubr.f32.gmra.mrb[0].mxu0 %v518
        %v725 = vpop.f32.mrb[0].mxu0
        %v726 = vadd.f32 %v574, %v725
        %v727 = vpop.f32.mrb[0].mxu0
        %v728 = vadd.f32 %v578, %v727
        %729 = vmatprep.mubr.f32.mxu0 0.0
        %730 = vmatmul.mubr.f32.gmra.mrb[0].mxu0 %v519
        %v731 = vpop.f32.mrb[0].mxu0
        %v732 = vadd.f32 %v574, %v731
        %v733 = vpop.f32.mrb[0].mxu0
        %v734 = vadd.f32 %v578, %v733
        %735 = vmatprep.mubr.f32.mxu0 0.0
        %736 = vmatmul.mubr.f32.gmra.mrb[0].mxu0 %v520
        %v737 = vpop.f32.mrb[0].mxu0
        %v738 = vadd.f32 %v574, %v737
        %v739 = vpop.f32.mrb[0].mxu0
        %v740 = vadd.f32 %v578, %v739
        %741 = vmatprep.mubr.f32.mxu0 0.0
        %742 = vmatmul.mubr.f32.gmra.mrb[0].mxu0 %v521
        %v743 = vpop.f32.mrb[0].mxu0
        %v744 = vadd.f32 %v574, %v743
        %v745 = vpop.f32.mrb[0].mxu0
        %v746 = vadd.f32 %v578, %v745
        %747 = vmatprep.mubr.f32.mxu0 0.0
        %748 = vmatmul.mubr.f32.gmra.mrb[0].mxu0 %v522
        %v749 = vpop.f32.mrb[0].mxu0
        %v750 = vadd.f32 %v574, %v749
        %v751 = vpop.f32.mrb[0].mxu0
        %v752 = vadd.f32 %v578, %v751
        %753 = vmatprep.mubr.f32.mxu0 0.0
        %754 = vmatmul.mubr.f32.gmra.mrb[0].mxu0 %v523
        %v755 = vpop.f32.mrb[0].mxu0
        %v756 = vadd.f32 %v574, %v755
        %v757 = vpop.f32.mrb[0].mxu0
        %v758 = vadd.f32 %v578, %v757
        %759 = vmatprep.mubr.f32.mxu0 0.0
        %760 = vmatmul.mubr.f32.gmra.mrb[0].mxu0 %v524
        %v761 = vpop.f32.mrb[0].mxu0
        %v762 = vadd.f32 %v574, %v761
        %v763 = vpop.f32.mrb[0].mxu0
        %v764 = vadd.f32 %v578, %v763
        %765 = vmatprep.mubr.f32.mxu0 0.0
        %766 = vmatmul.mubr.f32.gmra.mrb[0].mxu0 %v525
        %v767 = vpop.f32.mrb[0].mxu0
        %v768 = vadd.f32 %v574, %v767
        %v769 = vpop.f32.mrb[0].mxu0
        %v770 = vadd.f32 %v578, %v769
        %771 = vmatprep.mubr.f32.mxu0 0.0
        %772 = vmatmul.mubr.f32.gmra.mrb[0].mxu0 %v526
        %v773 = vpop.f32.mrb[0].mxu0
        %v774 = vadd.f32 %v574, %v773
        %v775 = vpop.f32.mrb[0].mxu0
        %v776 = vadd.f32 %v578, %v775
        %777 = vmatprep.mubr.f32.mxu0 0.0
        %778 = vmatmul.mubr.f32.gmra.mrb[0].mxu0 %v527
        %v779 = vpop.f32.mrb[0].mxu0
        %v780 = vadd.f32 %v574, %v779
        %v781 = vpop.f32.mrb[0].mxu0
        %v782 = vadd.f32 %v578, %v781
        %783 = vmatprep.mubr.f32.mxu0 0.0
        %784 = vmatmul.mubr.f32.gmra.mrb[0].mxu0 %v528
        %v785 = vpop.f32.mrb[0].mxu0
        %v786 = vadd.f32 %v574, %v785
        %v787 = vpop.f32.mrb[0].mxu0
        %v788 = vadd.f32 %v578, %v787
        %789 = vmatprep.mubr.f32.mxu0 0.0
        %790 = vmatmul.mubr.f32.gmra.mrb[0].mxu0 %v529
        %v791 = vpop.f32.mrb[0].mxu0
        %v792 = vadd.f32 %v574, %v791
        %v793 = vpop.f32.mrb[0].mxu0
        %v794 = vadd.f32 %v578, %v793
        %795 = vmatprep.mubr.f32.mxu0 0.0
        %796 = vmatmul.mubr.f32.gmra.mrb[0].mxu0 %v530
        %v797 = vpop.f32.mrb[0].mxu0
        %v798 = vadd.f32 %v574, %v797
        %v799 = vpop.f32.mrb[0].mxu0
        %v800 = vadd.f32 %v578, %v799
        %801 = vmatprep.mubr.f32.mxu0 0.0
        %802 = vmatmul.mubr.f32.gmra.mrb[0].mxu0 %v531
        %v803 = vpop.f32.mrb[0].mxu0
        %v804 = vadd.f32 %v574, %v803
        %v805 = vpop.f32.mrb[0].mxu0
        %v806 = vadd.f32 %v578, %v805
        %807 = vmatprep.mubr.f32.mxu0 0.0
        %808 = vmatmul.mubr.f32.gmra.mrb[0].mxu0 %v532
        %v809 = vpop.f32.mrb[0].mxu0
        %v810 = vadd.f32 %v574, %v809
        %v811 = vpop.f32.mrb[0].mxu0
        %v812 = vadd.f32 %v578, %v811
        %813 = vmatprep.mubr.f32.mxu0 0.0
        %814 = vmatmul.mubr.f32.gmra.mrb[0].mxu0 %v533
        %v815 = vpop.f32.mrb[0].mxu0
        %v816 = vadd.f32 %v574, %v815
        %v817 = vpop.f32.mrb[0].mxu0
        %v818 = vadd.f32 %v578, %v817
        %819 = vmatprep.mubr.f32.mxu0 0.0
        %820 = vmatmul.mubr.f32.gmra.mrb[0].mxu0 %v534
        %v821 = vpop.f32.mrb[0].mxu0
        %v822 = vadd.f32 %v574, %v821
        %v823 = vpop.f32.mrb[0].mxu0
        %v824 = vadd.f32 %v578, %v823
        %825 = vmatprep.mubr.f32.mxu0 0.0
        %826 = vmatmul.mubr.f32.gmra.mrb[0].mxu0 %v535
        %v827 = vpop.f32.mrb[0].mxu0
        %v828 = vadd.f32 %v574, %v827
        %v829 = vpop.f32.mrb[0].mxu0
        %v830 = vadd.f32 %v578, %v829
        %831 = vmatprep.mubr.f32.mxu0 0.0
        %832 = vmatmul.mubr.f32.gmra.mrb[0].mxu0 %v536
        %v833 = vpop.f32.mrb[0].mxu0
        %v834 = vadd.f32 %v574, %v833
        %v835 = vpop.f32.mrb[0].mxu0
        %v836 = vadd.f32 %v578, %v835
        %837 = vdwg.mxu0
        %v838 = vld [vmem:[%s391] sm:$0xff]
        %v839 = vld [vmem:[%s391 + $0x8] sm:$0xff]
        %v840 = vld [vmem:[%s391 + $0x10] sm:$0xff]
        %v841 = vld [vmem:[%s391 + $0x18] sm:$0xff]
        %v842 = vld [vmem:[%s391 + $0x20] sm:$0xff]
        %v843 = vld [vmem:[%s391 + $0x28] sm:$0xff]
        %v844 = vld [vmem:[%s391 + $0x30] sm:$0xff]
        %v845 = vld [vmem:[%s391 + $0x38] sm:$0xff]
        %v846 = vld [vmem:[%s391 + $0x40] sm:$0xff]
        %v847 = vld [vmem:[%s391 + $0x48] sm:$0xff]
        %v848 = vld [vmem:[%s391 + $0x50] sm:$0xff]
        %v849 = vld [vmem:[%s391 + $0x58] sm:$0xff]
        %v850 = vld [vmem:[%s391 + $0x60] sm:$0xff]
        %v851 = vld [vmem:[%s391 + $0x68] sm:$0xff]
        %v852 = vld [vmem:[%s391 + $0x70] sm:$0xff]
        %v853 = vld [vmem:[%s391 + $0x78] sm:$0xff]
        %v854 = vld [vmem:[%s391 + $0x80] sm:$0xff]
        %v855 = vld [vmem:[%s391 + $0x88] sm:$0xff]
        %v856 = vld [vmem:[%s391 + $0x90] sm:$0xff]
        %v857 = vld [vmem:[%s391 + $0x98] sm:$0xff]
        %v858 = vld [vmem:[%s391 + $0xa0] sm:$0xff]
        %v859 = vld [vmem:[%s391 + $0xa8] sm:$0xff]
        %v860 = vld [vmem:[%s391 + $0xb0] sm:$0xff]
        %v861 = vld [vmem:[%s391 + $0xb8] sm:$0xff]
        %v862 = vld [vmem:[%s391 + $0xc0] sm:$0xff]
        %v863 = vld [vmem:[%s391 + $0xc8] sm:$0xff]
        %v864 = vld [vmem:[%s391 + $0xd0] sm:$0xff]
        %v865 = vld [vmem:[%s391 + $0xd8] sm:$0xff]
        %v866 = vld [vmem:[%s391 + $0xe0] sm:$0xff]
        %v867 = vld [vmem:[%s391 + $0xe8] sm:$0xff]
        %v868 = vld [vmem:[%s391 + $0xf0] sm:$0xff]
        %v869 = vld [vmem:[%s391 + $0xf8] sm:$0xff]
        %v870 = vld [vmem:[%s465] sm:$0x3]
        %v872 = vlaneseq
        %v873 = vshrl.u32 %v872, 7
        %v874 = vsub.s32 0, %v873
        %v875 = vrot.slane %v870, %v874
        %v876 = vlaneseq
        %v877 = vshrl.u32 %v876, 7
        %v878 = vsub.s32 1, %v877
        %v879 = vrot.slane %v870, %v878
        %882 = vmatprep.subr.mxu0 %v839
        %883 = vmatpush1.msra.mxu0 %v838
        %884 = vmatprep.subr.mxu0 %v841
        %885 = vmatpush1.msra.mxu0 %v840
        %886 = vmatprep.subr.mxu0 %v843
        %887 = vmatpush1.msra.mxu0 %v842
        %888 = vmatprep.subr.mxu0 %v845
        %889 = vmatpush1.msra.mxu0 %v844
        %890 = vmatprep.subr.mxu0 %v847
        %891 = vmatpush1.msra.mxu0 %v846
        %892 = vmatprep.subr.mxu0 %v849
        %893 = vmatpush1.msra.mxu0 %v848
        %894 = vmatprep.subr.mxu0 %v851
        %895 = vmatpush1.msra.mxu0 %v850
        %896 = vmatprep.subr.mxu0 %v853
        %897 = vmatpush1.msra.mxu0 %v852
        %898 = vmatprep.subr.mxu0 %v855
        %899 = vmatpush1.msra.mxu0 %v854
        %900 = vmatprep.subr.mxu0 %v857
        %901 = vmatpush1.msra.mxu0 %v856
        %902 = vmatprep.subr.mxu0 %v859
        %903 = vmatpush1.msra.mxu0 %v858
        %904 = vmatprep.subr.mxu0 %v861
        %905 = vmatpush1.msra.mxu0 %v860
        %906 = vmatprep.subr.mxu0 %v863
        %907 = vmatpush1.msra.mxu0 %v862
        %908 = vmatprep.subr.mxu0 %v865
        %909 = vmatpush1.msra.mxu0 %v864
        %910 = vmatprep.subr.mxu0 %v867
        %911 = vmatpush1.msra.mxu0 %v866
        %912 = vmatprep.subr.mxu0 %v869
        %913 = vmatpush1.msra.mxu0 %v868
        %914 = vmatprep.subr.mxu0 0.0
        %915 = vmatpush1.msra.mxu0 0.0
        %916 = vmatprep.subr.mxu0 0.0
        %917 = vmatpush1.msra.mxu0 0.0
        %918 = vmatprep.subr.mxu0 0.0
        %919 = vmatpush1.msra.mxu0 0.0
        %920 = vmatprep.subr.mxu0 0.0
        %921 = vmatpush1.msra.mxu0 0.0
        %922 = vmatprep.subr.mxu0 0.0
        %923 = vmatpush1.msra.mxu0 0.0
        %924 = vmatprep.subr.mxu0 0.0
        %925 = vmatpush1.msra.mxu0 0.0
        %926 = vmatprep.subr.mxu0 0.0
        %927 = vmatpush1.msra.mxu0 0.0
        %928 = vmatprep.subr.mxu0 0.0
        %929 = vmatpush1.msra.mxu0 0.0
        %930 = vmatprep.subr.mxu0 0.0
        %931 = vmatpush1.msra.mxu0 0.0
        %932 = vmatprep.subr.mxu0 0.0
        %933 = vmatpush1.msra.mxu0 0.0
        %934 = vmatprep.subr.mxu0 0.0
        %935 = vmatpush1.msra.mxu0 0.0
        %936 = vmatprep.subr.mxu0 0.0
        %937 = vmatpush1.msra.mxu0 0.0
        %938 = vmatprep.subr.mxu0 0.0
        %939 = vmatpush1.msra.mxu0 0.0
        %940 = vmatprep.subr.mxu0 0.0
        %941 = vmatpush1.msra.mxu0 0.0
        %942 = vmatprep.subr.mxu0 0.0
        %943 = vmatpush1.msra.mxu0 0.0
        %944 = vmatprep.subr.mxu0 0.0
        %945 = vmatpush1.msra.mxu0 0.0
        %946 = vmatprep.mubr.f32.mxu0 0.0
        %947 = vmatmul.mubr.f32.gmra.mrb[0].mxu0 %v505
        %v948 = vpop.f32.mrb[0].mxu0
        %v949 = vadd.f32 %v875, %v948
        %v950 = vpop.f32.mrb[0].mxu0
        %v951 = vadd.f32 %v879, %v950
        %952 = vmatprep.mubr.f32.mxu0 0.0
        %953 = vmatmul.mubr.f32.gmra.mrb[0].mxu0 %v506
        %v954 = vpop.f32.mrb[0].mxu0
        %v955 = vadd.f32 %v875, %v954
        %v956 = vpop.f32.mrb[0].mxu0
        %v957 = vadd.f32 %v879, %v956
        %958 = vmatprep.mubr.f32.mxu0 0.0
        %959 = vmatmul.mubr.f32.gmra.mrb[0].mxu0 %v507
        %v960 = vpop.f32.mrb[0].mxu0
        %v961 = vadd.f32 %v875, %v960
        %v962 = vpop.f32.mrb[0].mxu0
        %v963 = vadd.f32 %v879, %v962
        %964 = vmatprep.mubr.f32.mxu0 0.0
        %965 = vmatmul.mubr.f32.gmra.mrb[0].mxu0 %v508
        %v966 = vpop.f32.mrb[0].mxu0
        %v967 = vadd.f32 %v875, %v966
        %v968 = vpop.f32.mrb[0].mxu0
        %v969 = vadd.f32 %v879, %v968
        %970 = vmatprep.mubr.f32.mxu0 0.0
        %971 = vmatmul.mubr.f32.gmra.mrb[0].mxu0 %v509
        %v972 = vpop.f32.mrb[0].mxu0
        %v973 = vadd.f32 %v875, %v972
        %v974 = vpop.f32.mrb[0].mxu0
        %v975 = vadd.f32 %v879, %v974
        %976 = vmatprep.mubr.f32.mxu0 0.0
        %977 = vmatmul.mubr.f32.gmra.mrb[0].mxu0 %v510
        %v978 = vpop.f32.mrb[0].mxu0
        %v979 = vadd.f32 %v875, %v978
        %v980 = vpop.f32.mrb[0].mxu0
        %v981 = vadd.f32 %v879, %v980
        %982 = vmatprep.mubr.f32.mxu0 0.0
        %983 = vmatmul.mubr.f32.gmra.mrb[0].mxu0 %v511
        %v984 = vpop.f32.mrb[0].mxu0
        %v985 = vadd.f32 %v875, %v984
        %v986 = vpop.f32.mrb[0].mxu0
        %v987 = vadd.f32 %v879, %v986
        %988 = vmatprep.mubr.f32.mxu0 0.0
        %989 = vmatmul.mubr.f32.gmra.mrb[0].mxu0 %v512
        %v990 = vpop.f32.mrb[0].mxu0
        %v991 = vadd.f32 %v875, %v990
        %v992 = vpop.f32.mrb[0].mxu0
        %v993 = vadd.f32 %v879, %v992
        %994 = vmatprep.mubr.f32.mxu0 0.0
        %995 = vmatmul.mubr.f32.gmra.mrb[0].mxu0 %v513
        %v996 = vpop.f32.mrb[0].mxu0
        %v997 = vadd.f32 %v875, %v996
        %v998 = vpop.f32.mrb[0].mxu0
        %v999 = vadd.f32 %v879, %v998
        %1000 = vmatprep.mubr.f32.mxu0 0.0
        %1001 = vmatmul.mubr.f32.gmra.mrb[0].mxu0 %v514
        %v1002 = vpop.f32.mrb[0].mxu0
        %v1003 = vadd.f32 %v875, %v1002
        %v1004 = vpop.f32.mrb[0].mxu0
        %v1005 = vadd.f32 %v879, %v1004
        %1006 = vmatprep.mubr.f32.mxu0 0.0
        %1007 = vmatmul.mubr.f32.gmra.mrb[0].mxu0 %v515
        %v1008 = vpop.f32.mrb[0].mxu0
        %v1009 = vadd.f32 %v875, %v1008
        %v1010 = vpop.f32.mrb[0].mxu0
        %v1011 = vadd.f32 %v879, %v1010
        %1012 = vmatprep.mubr.f32.mxu0 0.0
        %1013 = vmatmul.mubr.f32.gmra.mrb[0].mxu0 %v516
        %v1014 = vpop.f32.mrb[0].mxu0
        %v1015 = vadd.f32 %v875, %v1014
        %v1016 = vpop.f32.mrb[0].mxu0
        %v1017 = vadd.f32 %v879, %v1016
        %1018 = vmatprep.mubr.f32.mxu0 0.0
        %1019 = vmatmul.mubr.f32.gmra.mrb[0].mxu0 %v517
        %v1020 = vpop.f32.mrb[0].mxu0
        %v1021 = vadd.f32 %v875, %v1020
        %v1022 = vpop.f32.mrb[0].mxu0
        %v1023 = vadd.f32 %v879, %v1022
        %1024 = vmatprep.mubr.f32.mxu0 0.0
        %1025 = vmatmul.mubr.f32.gmra.mrb[0].mxu0 %v518
        %v1026 = vpop.f32.mrb[0].mxu0
        %v1027 = vadd.f32 %v875, %v1026
        %v1028 = vpop.f32.mrb[0].mxu0
        %v1029 = vadd.f32 %v879, %v1028
        %1030 = vmatprep.mubr.f32.mxu0 0.0
        %1031 = vmatmul.mubr.f32.gmra.mrb[0].mxu0 %v519
        %v1032 = vpop.f32.mrb[0].mxu0
        %v1033 = vadd.f32 %v875, %v1032
        %v1034 = vpop.f32.mrb[0].mxu0
        %v1035 = vadd.f32 %v879, %v1034
        %1036 = vmatprep.mubr.f32.mxu0 0.0
        %1037 = vmatmul.mubr.f32.gmra.mrb[0].mxu0 %v520
        %v1038 = vpop.f32.mrb[0].mxu0
        %v1039 = vadd.f32 %v875, %v1038
        %v1040 = vpop.f32.mrb[0].mxu0
        %v1041 = vadd.f32 %v879, %v1040
        %1042 = vmatprep.mubr.f32.mxu0 0.0
        %1043 = vmatmul.mubr.f32.gmra.mrb[0].mxu0 %v521
        %v1044 = vpop.f32.mrb[0].mxu0
        %v1045 = vadd.f32 %v875, %v1044
        %v1046 = vpop.f32.mrb[0].mxu0
        %v1047 = vadd.f32 %v879, %v1046
        %1048 = vmatprep.mubr.f32.mxu0 0.0
        %1049 = vmatmul.mubr.f32.gmra.mrb[0].mxu0 %v522
        %v1050 = vpop.f32.mrb[0].mxu0
        %v1051 = vadd.f32 %v875, %v1050
        %v1052 = vpop.f32.mrb[0].mxu0
        %v1053 = vadd.f32 %v879, %v1052
        %1054 = vmatprep.mubr.f32.mxu0 0.0
        %1055 = vmatmul.mubr.f32.gmra.mrb[0].mxu0 %v523
        %v1056 = vpop.f32.mrb[0].mxu0
        %v1057 = vadd.f32 %v875, %v1056
        %v1058 = vpop.f32.mrb[0].mxu0
        %v1059 = vadd.f32 %v879, %v1058
        %1060 = vmatprep.mubr.f32.mxu0 0.0
        %1061 = vmatmul.mubr.f32.gmra.mrb[0].mxu0 %v524
        %v1062 = vpop.f32.mrb[0].mxu0
        %v1063 = vadd.f32 %v875, %v1062
        %v1064 = vpop.f32.mrb[0].mxu0
        %v1065 = vadd.f32 %v879, %v1064
        %1066 = vmatprep.mubr.f32.mxu0 0.0
        %1067 = vmatmul.mubr.f32.gmra.mrb[0].mxu0 %v525
        %v1068 = vpop.f32.mrb[0].mxu0
        %v1069 = vadd.f32 %v875, %v1068
        %v1070 = vpop.f32.mrb[0].mxu0
        %v1071 = vadd.f32 %v879, %v1070
        %1072 = vmatprep.mubr.f32.mxu0 0.0
        %1073 = vmatmul.mubr.f32.gmra.mrb[0].mxu0 %v526
        %v1074 = vpop.f32.mrb[0].mxu0
        %v1075 = vadd.f32 %v875, %v1074
        %v1076 = vpop.f32.mrb[0].mxu0
        %v1077 = vadd.f32 %v879, %v1076
        %1078 = vmatprep.mubr.f32.mxu0 0.0
        %1079 = vmatmul.mubr.f32.gmra.mrb[0].mxu0 %v527
        %v1080 = vpop.f32.mrb[0].mxu0
        %v1081 = vadd.f32 %v875, %v1080
        %v1082 = vpop.f32.mrb[0].mxu0
        %v1083 = vadd.f32 %v879, %v1082
        %1084 = vmatprep.mubr.f32.mxu0 0.0
        %1085 = vmatmul.mubr.f32.gmra.mrb[0].mxu0 %v528
        %v1086 = vpop.f32.mrb[0].mxu0
        %v1087 = vadd.f32 %v875, %v1086
        %v1088 = vpop.f32.mrb[0].mxu0
        %v1089 = vadd.f32 %v879, %v1088
        %1090 = vmatprep.mubr.f32.mxu0 0.0
        %1091 = vmatmul.mubr.f32.gmra.mrb[0].mxu0 %v529
        %v1092 = vpop.f32.mrb[0].mxu0
        %v1093 = vadd.f32 %v875, %v1092
        %v1094 = vpop.f32.mrb[0].mxu0
        %v1095 = vadd.f32 %v879, %v1094
        %1096 = vmatprep.mubr.f32.mxu0 0.0
        %1097 = vmatmul.mubr.f32.gmra.mrb[0].mxu0 %v530
        %v1098 = vpop.f32.mrb[0].mxu0
        %v1099 = vadd.f32 %v875, %v1098
        %v1100 = vpop.f32.mrb[0].mxu0
        %v1101 = vadd.f32 %v879, %v1100
        %1102 = vmatprep.mubr.f32.mxu0 0.0
        %1103 = vmatmul.mubr.f32.gmra.mrb[0].mxu0 %v531
        %v1104 = vpop.f32.mrb[0].mxu0
        %v1105 = vadd.f32 %v875, %v1104
        %v1106 = vpop.f32.mrb[0].mxu0
        %v1107 = vadd.f32 %v879, %v1106
        %1108 = vmatprep.mubr.f32.mxu0 0.0
        %1109 = vmatmul.mubr.f32.gmra.mrb[0].mxu0 %v532
        %v1110 = vpop.f32.mrb[0].mxu0
        %v1111 = vadd.f32 %v875, %v1110
        %v1112 = vpop.f32.mrb[0].mxu0
        %v1113 = vadd.f32 %v879, %v1112
        %1114 = vmatprep.mubr.f32.mxu0 0.0
        %1115 = vmatmul.mubr.f32.gmra.mrb[0].mxu0 %v533
        %v1116 = vpop.f32.mrb[0].mxu0
        %v1117 = vadd.f32 %v875, %v1116
        %v1118 = vpop.f32.mrb[0].mxu0
        %v1119 = vadd.f32 %v879, %v1118
        %1120 = vmatprep.mubr.f32.mxu0 0.0
        %1121 = vmatmul.mubr.f32.gmra.mrb[0].mxu0 %v534
        %v1122 = vpop.f32.mrb[0].mxu0
        %v1123 = vadd.f32 %v875, %v1122
        %v1124 = vpop.f32.mrb[0].mxu0
        %v1125 = vadd.f32 %v879, %v1124
        %1126 = vmatprep.mubr.f32.mxu0 0.0
        %1127 = vmatmul.mubr.f32.gmra.mrb[0].mxu0 %v535
        %v1128 = vpop.f32.mrb[0].mxu0
        %v1129 = vadd.f32 %v875, %v1128
        %v1130 = vpop.f32.mrb[0].mxu0
        %v1131 = vadd.f32 %v879, %v1130
        %1132 = vmatprep.mubr.f32.mxu0 0.0
        %1133 = vmatmul.mubr.f32.gmra.mrb[0].mxu0 %v536
        %v1134 = vpop.f32.mrb[0].mxu0
        %v1135 = vadd.f32 %v875, %v1134
        %v1136 = vpop.f32.mrb[0].mxu0
        %v1137 = vadd.f32 %v879, %v1136
        %1138 = vdwg.mxu0
        %v1139 = vmul.f32 %v949, 0.5
        %v1140 = vmul.f32 %v951, 0.5
        %v1141 = vmul.f32 %v955, 0.5
        %v1142 = vmul.f32 %v957, 0.5
        %v1143 = vmul.f32 %v961, 0.5
        %v1144 = vmul.f32 %v963, 0.5
        %v1145 = vmul.f32 %v967, 0.5
        %v1146 = vmul.f32 %v969, 0.5
        %v1147 = vmul.f32 %v973, 0.5
        %v1148 = vmul.f32 %v975, 0.5
        %v1149 = vmul.f32 %v979, 0.5
        %v1150 = vmul.f32 %v981, 0.5
        %v1151 = vmul.f32 %v985, 0.5
        %v1152 = vmul.f32 %v987, 0.5
        %v1153 = vmul.f32 %v991, 0.5
        %v1154 = vmul.f32 %v993, 0.5
        %v1155 = vmul.f32 %v997, 0.5
        %v1156 = vmul.f32 %v999, 0.5
        %v1157 = vmul.f32 %v1003, 0.5
        %v1158 = vmul.f32 %v1005, 0.5
        %v1159 = vmul.f32 %v1009, 0.5
        %v1160 = vmul.f32 %v1011, 0.5
        %v1161 = vmul.f32 %v1015, 0.5
        %v1162 = vmul.f32 %v1017, 0.5
        %v1163 = vmul.f32 %v1021, 0.5
        %v1164 = vmul.f32 %v1023, 0.5
        %v1165 = vmul.f32 %v1027, 0.5
        %v1166 = vmul.f32 %v1029, 0.5
        %v1167 = vmul.f32 %v1033, 0.5
        %v1168 = vmul.f32 %v1035, 0.5
        %v1169 = vmul.f32 %v1039, 0.5
        %v1170 = vmul.f32 %v1041, 0.5
        %v1171 = vmul.f32 %v1045, 0.5
        %v1172 = vmul.f32 %v1047, 0.5
        %v1173 = vmul.f32 %v1051, 0.5
        %v1174 = vmul.f32 %v1053, 0.5
        %v1175 = vmul.f32 %v1057, 0.5
        %v1176 = vmul.f32 %v1059, 0.5
        %v1177 = vmul.f32 %v1063, 0.5
        %v1178 = vmul.f32 %v1065, 0.5
        %v1179 = vmul.f32 %v1069, 0.5
        %v1180 = vmul.f32 %v1071, 0.5
        %v1181 = vmul.f32 %v1075, 0.5
        %v1182 = vmul.f32 %v1077, 0.5
        %v1183 = vmul.f32 %v1081, 0.5
        %v1184 = vmul.f32 %v1083, 0.5
        %v1185 = vmul.f32 %v1087, 0.5
        %v1186 = vmul.f32 %v1089, 0.5
        %v1187 = vmul.f32 %v1093, 0.5
        %v1188 = vmul.f32 %v1095, 0.5
        %v1189 = vmul.f32 %v1099, 0.5
        %v1190 = vmul.f32 %v1101, 0.5
        %v1191 = vmul.f32 %v1105, 0.5
        %v1192 = vmul.f32 %v1107, 0.5
        %v1193 = vmul.f32 %v1111, 0.5
        %v1194 = vmul.f32 %v1113, 0.5
        %v1195 = vmul.f32 %v1117, 0.5
        %v1196 = vmul.f32 %v1119, 0.5
        %v1197 = vmul.f32 %v1123, 0.5
        %v1198 = vmul.f32 %v1125, 0.5
        %v1199 = vmul.f32 %v1129, 0.5
        %v1200 = vmul.f32 %v1131, 0.5
        %v1201 = vmul.f32 %v1135, 0.5
        %v1202 = vmul.f32 %v1137, 0.5
        %v1203 = vmul.f32 %v949, 0.70710677
        %v1204 = vmul.f32 %v951, 0.70710677
        %v1205 = vmul.f32 %v955, 0.70710677
        %v1206 = vmul.f32 %v957, 0.70710677
        %v1207 = vmul.f32 %v961, 0.70710677
        %v1208 = vmul.f32 %v963, 0.70710677
        %v1209 = vmul.f32 %v967, 0.70710677
        %v1210 = vmul.f32 %v969, 0.70710677
        %v1211 = vmul.f32 %v973, 0.70710677
        %v1212 = vmul.f32 %v975, 0.70710677
        %v1213 = vmul.f32 %v979, 0.70710677
        %v1214 = vmul.f32 %v981, 0.70710677
        %v1215 = vmul.f32 %v985, 0.70710677
        %v1216 = vmul.f32 %v987, 0.70710677
        %v1217 = vmul.f32 %v991, 0.70710677
        %v1218 = vmul.f32 %v993, 0.70710677
        %v1219 = vmul.f32 %v997, 0.70710677
        %v1220 = vmul.f32 %v999, 0.70710677
        %v1221 = vmul.f32 %v1003, 0.70710677
        %v1222 = vmul.f32 %v1005, 0.70710677
        %v1223 = vmul.f32 %v1009, 0.70710677
        %v1224 = vmul.f32 %v1011, 0.70710677
        %v1225 = vmul.f32 %v1015, 0.70710677
        %v1226 = vmul.f32 %v1017, 0.70710677
        %v1227 = vmul.f32 %v1021, 0.70710677
        %v1228 = vmul.f32 %v1023, 0.70710677
        %v1229 = vmul.f32 %v1027, 0.70710677
        %v1230 = vmul.f32 %v1029, 0.70710677
        %v1231 = vmul.f32 %v1033, 0.70710677
        %v1232 = vmul.f32 %v1035, 0.70710677
        %v1233 = vmul.f32 %v1039, 0.70710677
        %v1234 = vmul.f32 %v1041, 0.70710677
        %v1235 = vmul.f32 %v1045, 0.70710677
        %v1236 = vmul.f32 %v1047, 0.70710677
        %v1237 = vmul.f32 %v1051, 0.70710677
        %v1238 = vmul.f32 %v1053, 0.70710677
        %v1239 = vmul.f32 %v1057, 0.70710677
        %v1240 = vmul.f32 %v1059, 0.70710677
        %v1241 = vmul.f32 %v1063, 0.70710677
        %v1242 = vmul.f32 %v1065, 0.70710677
        %v1243 = vmul.f32 %v1069, 0.70710677
        %v1244 = vmul.f32 %v1071, 0.70710677
        %v1245 = vmul.f32 %v1075, 0.70710677
        %v1246 = vmul.f32 %v1077, 0.70710677
        %v1247 = vmul.f32 %v1081, 0.70710677
        %v1248 = vmul.f32 %v1083, 0.70710677
        %v1249 = vmul.f32 %v1087, 0.70710677
        %v1250 = vmul.f32 %v1089, 0.70710677
        %v1251 = vmul.f32 %v1093, 0.70710677
        %v1252 = vmul.f32 %v1095, 0.70710677
        %v1253 = vmul.f32 %v1099, 0.70710677
        %v1254 = vmul.f32 %v1101, 0.70710677
        %v1255 = vmul.f32 %v1105, 0.70710677
        %v1256 = vmul.f32 %v1107, 0.70710677
        %v1257 = vmul.f32 %v1111, 0.70710677
        %v1258 = vmul.f32 %v1113, 0.70710677
        %v1259 = vmul.f32 %v1117, 0.70710677
        %v1260 = vmul.f32 %v1119, 0.70710677
        %v1261 = vmul.f32 %v1123, 0.70710677
        %v1262 = vmul.f32 %v1125, 0.70710677
        %v1263 = vmul.f32 %v1129, 0.70710677
        %v1264 = vmul.f32 %v1131, 0.70710677
        %v1265 = vmul.f32 %v1135, 0.70710677
        %v1266 = vmul.f32 %v1137, 0.70710677
        %v1267 = verf.f32.pop %v1203
        %v1268 = verf.f32.pop %v1204
        %v1269 = verf.f32.pop %v1205
        %v1270 = verf.f32.pop %v1206
        %v1271 = verf.f32.pop %v1207
        %v1272 = verf.f32.pop %v1208
        %v1273 = verf.f32.pop %v1209
        %v1274 = verf.f32.pop %v1210
        %v1275 = verf.f32.pop %v1211
        %v1276 = verf.f32.pop %v1212
        %v1277 = verf.f32.pop %v1213
        %v1278 = verf.f32.pop %v1214
        %v1279 = verf.f32.pop %v1215
        %v1280 = verf.f32.pop %v1216
        %v1281 = verf.f32.pop %v1217
        %v1282 = verf.f32.pop %v1218
        %v1283 = verf.f32.pop %v1219
        %v1284 = verf.f32.pop %v1220
        %v1285 = verf.f32.pop %v1221
        %v1286 = verf.f32.pop %v1222
        %v1287 = verf.f32.pop %v1223
        %v1288 = verf.f32.pop %v1224
        %v1289 = verf.f32.pop %v1225
        %v1290 = verf.f32.pop %v1226
        %v1291 = verf.f32.pop %v1227
        %v1292 = verf.f32.pop %v1228
        %v1293 = verf.f32.pop %v1229
        %v1294 = verf.f32.pop %v1230
        %v1295 = verf.f32.pop %v1231
        %v1296 = verf.f32.pop %v1232
        %v1297 = verf.f32.pop %v1233
        %v1298 = verf.f32.pop %v1234
        %v1299 = verf.f32.pop %v1235
        %v1300 = verf.f32.pop %v1236
        %v1301 = verf.f32.pop %v1237
        %v1302 = verf.f32.pop %v1238
        %v1303 = verf.f32.pop %v1239
        %v1304 = verf.f32.pop %v1240
        %v1305 = verf.f32.pop %v1241
        %v1306 = verf.f32.pop %v1242
        %v1307 = verf.f32.pop %v1243
        %v1308 = verf.f32.pop %v1244
        %v1309 = verf.f32.pop %v1245
        %v1310 = verf.f32.pop %v1246
        %v1311 = verf.f32.pop %v1247
        %v1312 = verf.f32.pop %v1248
        %v1313 = verf.f32.pop %v1249
        %v1314 = verf.f32.pop %v1250
        %v1315 = verf.f32.pop %v1251
        %v1316 = verf.f32.pop %v1252
        %v1317 = verf.f32.pop %v1253
        %v1318 = verf.f32.pop %v1254
        %v1319 = verf.f32.pop %v1255
        %v1320 = verf.f32.pop %v1256
        %v1321 = verf.f32.pop %v1257
        %v1322 = verf.f32.pop %v1258
        %v1323 = verf.f32.pop %v1259
        %v1324 = verf.f32.pop %v1260
        %v1325 = verf.f32.pop %v1261
        %v1326 = verf.f32.pop %v1262
        %v1327 = verf.f32.pop %v1263
        %v1328 = verf.f32.pop %v1264
        %v1329 = verf.f32.pop %v1265
        %v1330 = verf.f32.pop %v1266
        %v1331 = vadd.f32 %v1267, 1.0
        %v1332 = vadd.f32 %v1268, 1.0
        %v1333 = vadd.f32 %v1269, 1.0
        %v1334 = vadd.f32 %v1270, 1.0
        %v1335 = vadd.f32 %v1271, 1.0
        %v1336 = vadd.f32 %v1272, 1.0
        %v1337 = vadd.f32 %v1273, 1.0
        %v1338 = vadd.f32 %v1274, 1.0
        %v1339 = vadd.f32 %v1275, 1.0
        %v1340 = vadd.f32 %v1276, 1.0
        %v1341 = vadd.f32 %v1277, 1.0
        %v1342 = vadd.f32 %v1278, 1.0
        %v1343 = vadd.f32 %v1279, 1.0
        %v1344 = vadd.f32 %v1280, 1.0
        %v1345 = vadd.f32 %v1281, 1.0
        %v1346 = vadd.f32 %v1282, 1.0
        %v1347 = vadd.f32 %v1283, 1.0
        %v1348 = vadd.f32 %v1284, 1.0
        %v1349 = vadd.f32 %v1285, 1.0
        %v1350 = vadd.f32 %v1286, 1.0
        %v1351 = vadd.f32 %v1287, 1.0
        %v1352 = vadd.f32 %v1288, 1.0
        %v1353 = vadd.f32 %v1289, 1.0
        %v1354 = vadd.f32 %v1290, 1.0
        %v1355 = vadd.f32 %v1291, 1.0
        %v1356 = vadd.f32 %v1292, 1.0
        %v1357 = vadd.f32 %v1293, 1.0
        %v1358 = vadd.f32 %v1294, 1.0
        %v1359 = vadd.f32 %v1295, 1.0
        %v1360 = vadd.f32 %v1296, 1.0
        %v1361 = vadd.f32 %v1297, 1.0
        %v1362 = vadd.f32 %v1298, 1.0
        %v1363 = vadd.f32 %v1299, 1.0
        %v1364 = vadd.f32 %v1300, 1.0
        %v1365 = vadd.f32 %v1301, 1.0
        %v1366 = vadd.f32 %v1302, 1.0
        %v1367 = vadd.f32 %v1303, 1.0
        %v1368 = vadd.f32 %v1304, 1.0
        %v1369 = vadd.f32 %v1305, 1.0
        %v1370 = vadd.f32 %v1306, 1.0
        %v1371 = vadd.f32 %v1307, 1.0
        %v1372 = vadd.f32 %v1308, 1.0
        %v1373 = vadd.f32 %v1309, 1.0
        %v1374 = vadd.f32 %v1310, 1.0
        %v1375 = vadd.f32 %v1311, 1.0
        %v1376 = vadd.f32 %v1312, 1.0
        %v1377 = vadd.f32 %v1313, 1.0
        %v1378 = vadd.f32 %v1314, 1.0
        %v1379 = vadd.f32 %v1315, 1.0
        %v1380 = vadd.f32 %v1316, 1.0
        %v1381 = vadd.f32 %v1317, 1.0
        %v1382 = vadd.f32 %v1318, 1.0
        %v1383 = vadd.f32 %v1319, 1.0
        %v1384 = vadd.f32 %v1320, 1.0
        %v1385 = vadd.f32 %v1321, 1.0
        %v1386 = vadd.f32 %v1322, 1.0
        %v1387 = vadd.f32 %v1323, 1.0
        %v1388 = vadd.f32 %v1324, 1.0
        %v1389 = vadd.f32 %v1325, 1.0
        %v1390 = vadd.f32 %v1326, 1.0
        %v1391 = vadd.f32 %v1327, 1.0
        %v1392 = vadd.f32 %v1328, 1.0
        %v1393 = vadd.f32 %v1329, 1.0
        %v1394 = vadd.f32 %v1330, 1.0
        %v1395 = vmul.f32 %v1139, %v1331
        %v1396 = vmul.f32 %v1140, %v1332
        %v1397 = vmul.f32 %v1141, %v1333
        %v1398 = vmul.f32 %v1142, %v1334
        %v1399 = vmul.f32 %v1143, %v1335
        %v1400 = vmul.f32 %v1144, %v1336
        %v1401 = vmul.f32 %v1145, %v1337
        %v1402 = vmul.f32 %v1146, %v1338
        %v1403 = vmul.f32 %v1147, %v1339
        %v1404 = vmul.f32 %v1148, %v1340
        %v1405 = vmul.f32 %v1149, %v1341
        %v1406 = vmul.f32 %v1150, %v1342
        %v1407 = vmul.f32 %v1151, %v1343
        %v1408 = vmul.f32 %v1152, %v1344
        %v1409 = vmul.f32 %v1153, %v1345
        %v1410 = vmul.f32 %v1154, %v1346
        %v1411 = vmul.f32 %v1155, %v1347
        %v1412 = vmul.f32 %v1156, %v1348
        %v1413 = vmul.f32 %v1157, %v1349
        %v1414 = vmul.f32 %v1158, %v1350
        %v1415 = vmul.f32 %v1159, %v1351
        %v1416 = vmul.f32 %v1160, %v1352
        %v1417 = vmul.f32 %v1161, %v1353
        %v1418 = vmul.f32 %v1162, %v1354
        %v1419 = vmul.f32 %v1163, %v1355
        %v1420 = vmul.f32 %v1164, %v1356
        %v1421 = vmul.f32 %v1165, %v1357
        %v1422 = vmul.f32 %v1166, %v1358
        %v1423 = vmul.f32 %v1167, %v1359
        %v1424 = vmul.f32 %v1168, %v1360
        %v1425 = vmul.f32 %v1169, %v1361
        %v1426 = vmul.f32 %v1170, %v1362
        %v1427 = vmul.f32 %v1171, %v1363
        %v1428 = vmul.f32 %v1172, %v1364
        %v1429 = vmul.f32 %v1173, %v1365
        %v1430 = vmul.f32 %v1174, %v1366
        %v1431 = vmul.f32 %v1175, %v1367
        %v1432 = vmul.f32 %v1176, %v1368
        %v1433 = vmul.f32 %v1177, %v1369
        %v1434 = vmul.f32 %v1178, %v1370
        %v1435 = vmul.f32 %v1179, %v1371
        %v1436 = vmul.f32 %v1180, %v1372
        %v1437 = vmul.f32 %v1181, %v1373
        %v1438 = vmul.f32 %v1182, %v1374
        %v1439 = vmul.f32 %v1183, %v1375
        %v1440 = vmul.f32 %v1184, %v1376
        %v1441 = vmul.f32 %v1185, %v1377
        %v1442 = vmul.f32 %v1186, %v1378
        %v1443 = vmul.f32 %v1187, %v1379
        %v1444 = vmul.f32 %v1188, %v1380
        %v1445 = vmul.f32 %v1189, %v1381
        %v1446 = vmul.f32 %v1190, %v1382
        %v1447 = vmul.f32 %v1191, %v1383
        %v1448 = vmul.f32 %v1192, %v1384
        %v1449 = vmul.f32 %v1193, %v1385
        %v1450 = vmul.f32 %v1194, %v1386
        %v1451 = vmul.f32 %v1195, %v1387
        %v1452 = vmul.f32 %v1196, %v1388
        %v1453 = vmul.f32 %v1197, %v1389
        %v1454 = vmul.f32 %v1198, %v1390
        %v1455 = vmul.f32 %v1199, %v1391
        %v1456 = vmul.f32 %v1200, %v1392
        %v1457 = vmul.f32 %v1201, %v1393
        %v1458 = vmul.f32 %v1202, %v1394
        %v1459 = vmul.f32 %v648, %v1395
        %v1460 = vmul.f32 %v650, %v1396
        %v1461 = vmul.f32 %v654, %v1397
        %v1462 = vmul.f32 %v656, %v1398
        %v1463 = vmul.f32 %v660, %v1399
        %v1464 = vmul.f32 %v662, %v1400
        %v1465 = vmul.f32 %v666, %v1401
        %v1466 = vmul.f32 %v668, %v1402
        %v1467 = vmul.f32 %v672, %v1403
        %v1468 = vmul.f32 %v674, %v1404
        %v1469 = vmul.f32 %v678, %v1405
        %v1470 = vmul.f32 %v680, %v1406
        %v1471 = vmul.f32 %v684, %v1407
        %v1472 = vmul.f32 %v686, %v1408
        %v1473 = vmul.f32 %v690, %v1409
        %v1474 = vmul.f32 %v692, %v1410
        %v1475 = vmul.f32 %v696, %v1411
        %v1476 = vmul.f32 %v698, %v1412
        %v1477 = vmul.f32 %v702, %v1413
        %v1478 = vmul.f32 %v704, %v1414
        %v1479 = vmul.f32 %v708, %v1415
        %v1480 = vmul.f32 %v710, %v1416
        %v1481 = vmul.f32 %v714, %v1417
        %v1482 = vmul.f32 %v716, %v1418
        %v1483 = vmul.f32 %v720, %v1419
        %v1484 = vmul.f32 %v722, %v1420
        %v1485 = vmul.f32 %v726, %v1421
        %v1486 = vmul.f32 %v728, %v1422
        %v1487 = vmul.f32 %v732, %v1423
        %v1488 = vmul.f32 %v734, %v1424
        %v1489 = vmul.f32 %v738, %v1425
        %v1490 = vmul.f32 %v740, %v1426
        %v1491 = vmul.f32 %v744, %v1427
        %v1492 = vmul.f32 %v746, %v1428
        %v1493 = vmul.f32 %v750, %v1429
        %v1494 = vmul.f32 %v752, %v1430
        %v1495 = vmul.f32 %v756, %v1431
        %v1496 = vmul.f32 %v758, %v1432
        %v1497 = vmul.f32 %v762, %v1433
        %v1498 = vmul.f32 %v764, %v1434
        %v1499 = vmul.f32 %v768, %v1435
        %v1500 = vmul.f32 %v770, %v1436
        %v1501 = vmul.f32 %v774, %v1437
        %v1502 = vmul.f32 %v776, %v1438
        %v1503 = vmul.f32 %v780, %v1439
        %v1504 = vmul.f32 %v782, %v1440
        %v1505 = vmul.f32 %v786, %v1441
        %v1506 = vmul.f32 %v788, %v1442
        %v1507 = vmul.f32 %v792, %v1443
        %v1508 = vmul.f32 %v794, %v1444
        %v1509 = vmul.f32 %v798, %v1445
        %v1510 = vmul.f32 %v800, %v1446
        %v1511 = vmul.f32 %v804, %v1447
        %v1512 = vmul.f32 %v806, %v1448
        %v1513 = vmul.f32 %v810, %v1449
        %v1514 = vmul.f32 %v812, %v1450
        %v1515 = vmul.f32 %v816, %v1451
        %v1516 = vmul.f32 %v818, %v1452
        %v1517 = vmul.f32 %v822, %v1453
        %v1518 = vmul.f32 %v824, %v1454
        %v1519 = vmul.f32 %v828, %v1455
        %v1520 = vmul.f32 %v830, %v1456
        %v1521 = vmul.f32 %v834, %v1457
        %v1522 = vmul.f32 %v836, %v1458
        %v1523 = vld [vmem:[#allocation2] sm:$0xff]
        %v1524 = vld [vmem:[#allocation2 + $0x8] sm:$0xff]
        %v1525 = vld [vmem:[#allocation2 + $0x10] sm:$0xff]
        %v1526 = vld [vmem:[#allocation2 + $0x18] sm:$0xff]
        %v1527 = vld [vmem:[#allocation2 + $0x20] sm:$0xff]
        %v1528 = vld [vmem:[#allocation2 + $0x28] sm:$0xff]
        %v1529 = vld [vmem:[#allocation2 + $0x30] sm:$0xff]
        %v1530 = vld [vmem:[#allocation2 + $0x38] sm:$0xff]
        %v1531 = vld [vmem:[#allocation2 + $0x40] sm:$0xff]
        %v1532 = vld [vmem:[#allocation2 + $0x48] sm:$0xff]
        %v1533 = vld [vmem:[#allocation2 + $0x50] sm:$0xff]
        %v1534 = vld [vmem:[#allocation2 + $0x58] sm:$0xff]
        %v1535 = vld [vmem:[#allocation2 + $0x60] sm:$0xff]
        %v1536 = vld [vmem:[#allocation2 + $0x68] sm:$0xff]
        %v1537 = vld [vmem:[#allocation2 + $0x70] sm:$0xff]
        %v1538 = vld [vmem:[#allocation2 + $0x78] sm:$0xff]
        %v1539 = vld [vmem:[#allocation2 + $0x80] sm:$0xff]
        %v1540 = vld [vmem:[#allocation2 + $0x88] sm:$0xff]
        %v1541 = vld [vmem:[#allocation2 + $0x90] sm:$0xff]
        %v1542 = vld [vmem:[#allocation2 + $0x98] sm:$0xff]
        %v1543 = vld [vmem:[#allocation2 + $0xa0] sm:$0xff]
        %v1544 = vld [vmem:[#allocation2 + $0xa8] sm:$0xff]
        %v1545 = vld [vmem:[#allocation2 + $0xb0] sm:$0xff]
        %v1546 = vld [vmem:[#allocation2 + $0xb8] sm:$0xff]
        %v1547 = vld [vmem:[#allocation2 + $0xc0] sm:$0xff]
        %v1548 = vld [vmem:[#allocation2 + $0xc8] sm:$0xff]
        %v1549 = vld [vmem:[#allocation2 + $0xd0] sm:$0xff]
        %v1550 = vld [vmem:[#allocation2 + $0xd8] sm:$0xff]
        %v1551 = vld [vmem:[#allocation2 + $0xe0] sm:$0xff]
        %v1552 = vld [vmem:[#allocation2 + $0xe8] sm:$0xff]
        %v1553 = vld [vmem:[#allocation2 + $0xf0] sm:$0xff]
        %v1554 = vld [vmem:[#allocation2 + $0xf8] sm:$0xff]
        %v1555 = vld [vmem:[%s400] sm:$0xff]
        %v1556 = vld [vmem:[%s400 + $0x8] sm:$0xff]
        %v1557 = vld [vmem:[%s400 + $0x10] sm:$0xff]
        %v1558 = vld [vmem:[%s400 + $0x18] sm:$0xff]
        %v1559 = vld [vmem:[%s400 + $0x20] sm:$0xff]
        %v1560 = vld [vmem:[%s400 + $0x28] sm:$0xff]
        %v1561 = vld [vmem:[%s400 + $0x30] sm:$0xff]
        %v1562 = vld [vmem:[%s400 + $0x38] sm:$0xff]
        %v1563 = vld [vmem:[%s400 + $0x40] sm:$0xff]
        %v1564 = vld [vmem:[%s400 + $0x48] sm:$0xff]
        %v1565 = vld [vmem:[%s400 + $0x50] sm:$0xff]
        %v1566 = vld [vmem:[%s400 + $0x58] sm:$0xff]
        %v1567 = vld [vmem:[%s400 + $0x60] sm:$0xff]
        %v1568 = vld [vmem:[%s400 + $0x68] sm:$0xff]
        %v1569 = vld [vmem:[%s400 + $0x70] sm:$0xff]
        %v1570 = vld [vmem:[%s400 + $0x78] sm:$0xff]
        %v1571 = vld [vmem:[%s400 + $0x80] sm:$0xff]
        %v1572 = vld [vmem:[%s400 + $0x88] sm:$0xff]
        %v1573 = vld [vmem:[%s400 + $0x90] sm:$0xff]
        %v1574 = vld [vmem:[%s400 + $0x98] sm:$0xff]
        %v1575 = vld [vmem:[%s400 + $0xa0] sm:$0xff]
        %v1576 = vld [vmem:[%s400 + $0xa8] sm:$0xff]
        %v1577 = vld [vmem:[%s400 + $0xb0] sm:$0xff]
        %v1578 = vld [vmem:[%s400 + $0xb8] sm:$0xff]
        %v1579 = vld [vmem:[%s400 + $0xc0] sm:$0xff]
        %v1580 = vld [vmem:[%s400 + $0xc8] sm:$0xff]
        %v1581 = vld [vmem:[%s400 + $0xd0] sm:$0xff]
        %v1582 = vld [vmem:[%s400 + $0xd8] sm:$0xff]
        %v1583 = vld [vmem:[%s400 + $0xe0] sm:$0xff]
        %v1584 = vld [vmem:[%s400 + $0xe8] sm:$0xff]
        %v1585 = vld [vmem:[%s400 + $0xf0] sm:$0xff]
        %v1586 = vld [vmem:[%s400 + $0xf8] sm:$0xff]
        %1587 = vmatprep.subr.mxu0 0.0
        %1588 = vmatpush1.msra.mxu0 %v1555
        %1589 = vmatprep.subr.mxu0 0.0
        %1590 = vmatpush1.msra.mxu0 %v1556
        %1591 = vmatprep.subr.mxu0 0.0
        %1592 = vmatpush1.msra.mxu0 %v1557
        %1593 = vmatprep.subr.mxu0 0.0
        %1594 = vmatpush1.msra.mxu0 %v1558
        %1595 = vmatprep.subr.mxu0 0.0
        %1596 = vmatpush1.msra.mxu0 %v1559
        %1597 = vmatprep.subr.mxu0 0.0
        %1598 = vmatpush1.msra.mxu0 %v1560
        %1599 = vmatprep.subr.mxu0 0.0
        %1600 = vmatpush1.msra.mxu0 %v1561
        %1601 = vmatprep.subr.mxu0 0.0
        %1602 = vmatpush1.msra.mxu0 %v1562
        %1603 = vmatprep.subr.mxu0 0.0
        %1604 = vmatpush1.msra.mxu0 %v1563
        %1605 = vmatprep.subr.mxu0 0.0
        %1606 = vmatpush1.msra.mxu0 %v1564
        %1607 = vmatprep.subr.mxu0 0.0
        %1608 = vmatpush1.msra.mxu0 %v1565
        %1609 = vmatprep.subr.mxu0 0.0
        %1610 = vmatpush1.msra.mxu0 %v1566
        %1611 = vmatprep.subr.mxu0 0.0
        %1612 = vmatpush1.msra.mxu0 %v1567
        %1613 = vmatprep.subr.mxu0 0.0
        %1614 = vmatpush1.msra.mxu0 %v1568
        %1615 = vmatprep.subr.mxu0 0.0
        %1616 = vmatpush1.msra.mxu0 %v1569
        %1617 = vmatprep.subr.mxu0 0.0
        %1618 = vmatpush1.msra.mxu0 %v1570
        %1619 = vmatprep.subr.mxu0 0.0
        %1620 = vmatpush1.msra.mxu0 %v1571
        %1621 = vmatprep.subr.mxu0 0.0
        %1622 = vmatpush1.msra.mxu0 %v1572
        %1623 = vmatprep.subr.mxu0 0.0
        %1624 = vmatpush1.msra.mxu0 %v1573
        %1625 = vmatprep.subr.mxu0 0.0
        %1626 = vmatpush1.msra.mxu0 %v1574
        %1627 = vmatprep.subr.mxu0 0.0
        %1628 = vmatpush1.msra.mxu0 %v1575
        %1629 = vmatprep.subr.mxu0 0.0
        %1630 = vmatpush1.msra.mxu0 %v1576
        %1631 = vmatprep.subr.mxu0 0.0
        %1632 = vmatpush1.msra.mxu0 %v1577
        %1633 = vmatprep.subr.mxu0 0.0
        %1634 = vmatpush1.msra.mxu0 %v1578
        %1635 = vmatprep.subr.mxu0 0.0
        %1636 = vmatpush1.msra.mxu0 %v1579
        %1637 = vmatprep.subr.mxu0 0.0
        %1638 = vmatpush1.msra.mxu0 %v1580
        %1639 = vmatprep.subr.mxu0 0.0
        %1640 = vmatpush1.msra.mxu0 %v1581
        %1641 = vmatprep.subr.mxu0 0.0
        %1642 = vmatpush1.msra.mxu0 %v1582
        %1643 = vmatprep.subr.mxu0 0.0
        %1644 = vmatpush1.msra.mxu0 %v1583
        %1645 = vmatprep.subr.mxu0 0.0
        %1646 = vmatpush1.msra.mxu0 %v1584
        %1647 = vmatprep.subr.mxu0 0.0
        %1648 = vmatpush1.msra.mxu0 %v1585
        %1649 = vmatprep.subr.mxu0 0.0
        %1650 = vmatpush1.msra.mxu0 %v1586
        %1651 = vmatprep.mubr.f32.mxu0 %v1460
        %1652 = vmatmul.mubr.f32.gmra.mrb[0].mxu0 %v1459
        %v1653 = vpop.f32.mrb[0].mxu0
        %v1654 = vadd.f32 0.0, %v1653
        %v1655 = vpop.f32.mrb[0].mxu0
        %1656 = vmatprep.mubr.f32.mxu0 %v1462
        %1657 = vmatmul.mubr.f32.gmra.mrb[0].mxu0 %v1461
        %v1658 = vpop.f32.mrb[0].mxu0
        %v1659 = vadd.f32 0.0, %v1658
        %v1660 = vpop.f32.mrb[0].mxu0
        %1661 = vmatprep.mubr.f32.mxu0 %v1464
        %1662 = vmatmul.mubr.f32.gmra.mrb[0].mxu0 %v1463
        %v1663 = vpop.f32.mrb[0].mxu0
        %v1664 = vadd.f32 0.0, %v1663
        %v1665 = vpop.f32.mrb[0].mxu0
        %1666 = vmatprep.mubr.f32.mxu0 %v1466
        %1667 = vmatmul.mubr.f32.gmra.mrb[0].mxu0 %v1465
        %v1668 = vpop.f32.mrb[0].mxu0
        %v1669 = vadd.f32 0.0, %v1668
        %v1670 = vpop.f32.mrb[0].mxu0
        %1671 = vmatprep.mubr.f32.mxu0 %v1468
        %1672 = vmatmul.mubr.f32.gmra.mrb[0].mxu0 %v1467
        %v1673 = vpop.f32.mrb[0].mxu0
        %v1674 = vadd.f32 0.0, %v1673
        %v1675 = vpop.f32.mrb[0].mxu0
        %1676 = vmatprep.mubr.f32.mxu0 %v1470
        %1677 = vmatmul.mubr.f32.gmra.mrb[0].mxu0 %v1469
        %v1678 = vpop.f32.mrb[0].mxu0
        %v1679 = vadd.f32 0.0, %v1678
        %v1680 = vpop.f32.mrb[0].mxu0
        %1681 = vmatprep.mubr.f32.mxu0 %v1472
        %1682 = vmatmul.mubr.f32.gmra.mrb[0].mxu0 %v1471
        %v1683 = vpop.f32.mrb[0].mxu0
        %v1684 = vadd.f32 0.0, %v1683
        %v1685 = vpop.f32.mrb[0].mxu0
        %1686 = vmatprep.mubr.f32.mxu0 %v1474
        %1687 = vmatmul.mubr.f32.gmra.mrb[0].mxu0 %v1473
        %v1688 = vpop.f32.mrb[0].mxu0
        %v1689 = vadd.f32 0.0, %v1688
        %v1690 = vpop.f32.mrb[0].mxu0
        %1691 = vmatprep.mubr.f32.mxu0 %v1476
        %1692 = vmatmul.mubr.f32.gmra.mrb[0].mxu0 %v1475
        %v1693 = vpop.f32.mrb[0].mxu0
        %v1694 = vadd.f32 0.0, %v1693
        %v1695 = vpop.f32.mrb[0].mxu0
        %1696 = vmatprep.mubr.f32.mxu0 %v1478
        %1697 = vmatmul.mubr.f32.gmra.mrb[0].mxu0 %v1477
        %v1698 = vpop.f32.mrb[0].mxu0
        %v1699 = vadd.f32 0.0, %v1698
        %v1700 = vpop.f32.mrb[0].mxu0
        %1701 = vmatprep.mubr.f32.mxu0 %v1480
        %1702 = vmatmul.mubr.f32.gmra.mrb[0].mxu0 %v1479
        %v1703 = vpop.f32.mrb[0].mxu0
        %v1704 = vadd.f32 0.0, %v1703
        %v1705 = vpop.f32.mrb[0].mxu0
        %1706 = vmatprep.mubr.f32.mxu0 %v1482
        %1707 = vmatmul.mubr.f32.gmra.mrb[0].mxu0 %v1481
        %v1708 = vpop.f32.mrb[0].mxu0
        %v1709 = vadd.f32 0.0, %v1708
        %v1710 = vpop.f32.mrb[0].mxu0
        %1711 = vmatprep.mubr.f32.mxu0 %v1484
        %1712 = vmatmul.mubr.f32.gmra.mrb[0].mxu0 %v1483
        %v1713 = vpop.f32.mrb[0].mxu0
        %v1714 = vadd.f32 0.0, %v1713
        %v1715 = vpop.f32.mrb[0].mxu0
        %1716 = vmatprep.mubr.f32.mxu0 %v1486
        %1717 = vmatmul.mubr.f32.gmra.mrb[0].mxu0 %v1485
        %v1718 = vpop.f32.mrb[0].mxu0
        %v1719 = vadd.f32 0.0, %v1718
        %v1720 = vpop.f32.mrb[0].mxu0
        %1721 = vmatprep.mubr.f32.mxu0 %v1488
        %1722 = vmatmul.mubr.f32.gmra.mrb[0].mxu0 %v1487
        %v1723 = vpop.f32.mrb[0].mxu0
        %v1724 = vadd.f32 0.0, %v1723
        %v1725 = vpop.f32.mrb[0].mxu0
        %1726 = vmatprep.mubr.f32.mxu0 %v1490
        %1727 = vmatmul.mubr.f32.gmra.mrb[0].mxu0 %v1489
        %v1728 = vpop.f32.mrb[0].mxu0
        %v1729 = vadd.f32 0.0, %v1728
        %v1730 = vpop.f32.mrb[0].mxu0
        %1731 = vmatprep.mubr.f32.mxu0 %v1492
        %1732 = vmatmul.mubr.f32.gmra.mrb[0].mxu0 %v1491
        %v1733 = vpop.f32.mrb[0].mxu0
        %v1734 = vadd.f32 0.0, %v1733
        %v1735 = vpop.f32.mrb[0].mxu0
        %1736 = vmatprep.mubr.f32.mxu0 %v1494
        %1737 = vmatmul.mubr.f32.gmra.mrb[0].mxu0 %v1493
        %v1738 = vpop.f32.mrb[0].mxu0
        %v1739 = vadd.f32 0.0, %v1738
        %v1740 = vpop.f32.mrb[0].mxu0
        %1741 = vmatprep.mubr.f32.mxu0 %v1496
        %1742 = vmatmul.mubr.f32.gmra.mrb[0].mxu0 %v1495
        %v1743 = vpop.f32.mrb[0].mxu0
        %v1744 = vadd.f32 0.0, %v1743
        %v1745 = vpop.f32.mrb[0].mxu0
        %1746 = vmatprep.mubr.f32.mxu0 %v1498
        %1747 = vmatmul.mubr.f32.gmra.mrb[0].mxu0 %v1497
        %v1748 = vpop.f32.mrb[0].mxu0
        %v1749 = vadd.f32 0.0, %v1748
        %v1750 = vpop.f32.mrb[0].mxu0
        %1751 = vmatprep.mubr.f32.mxu0 %v1500
        %1752 = vmatmul.mubr.f32.gmra.mrb[0].mxu0 %v1499
        %v1753 = vpop.f32.mrb[0].mxu0
        %v1754 = vadd.f32 0.0, %v1753
        %v1755 = vpop.f32.mrb[0].mxu0
        %1756 = vmatprep.mubr.f32.mxu0 %v1502
        %1757 = vmatmul.mubr.f32.gmra.mrb[0].mxu0 %v1501
        %v1758 = vpop.f32.mrb[0].mxu0
        %v1759 = vadd.f32 0.0, %v1758
        %v1760 = vpop.f32.mrb[0].mxu0
        %1761 = vmatprep.mubr.f32.mxu0 %v1504
        %1762 = vmatmul.mubr.f32.gmra.mrb[0].mxu0 %v1503
        %v1763 = vpop.f32.mrb[0].mxu0
        %v1764 = vadd.f32 0.0, %v1763
        %v1765 = vpop.f32.mrb[0].mxu0
        %1766 = vmatprep.mubr.f32.mxu0 %v1506
        %1767 = vmatmul.mubr.f32.gmra.mrb[0].mxu0 %v1505
        %v1768 = vpop.f32.mrb[0].mxu0
        %v1769 = vadd.f32 0.0, %v1768
        %v1770 = vpop.f32.mrb[0].mxu0
        %1771 = vmatprep.mubr.f32.mxu0 %v1508
        %1772 = vmatmul.mubr.f32.gmra.mrb[0].mxu0 %v1507
        %v1773 = vpop.f32.mrb[0].mxu0
        %v1774 = vadd.f32 0.0, %v1773
        %v1775 = vpop.f32.mrb[0].mxu0
        %1776 = vmatprep.mubr.f32.mxu0 %v1510
        %1777 = vmatmul.mubr.f32.gmra.mrb[0].mxu0 %v1509
        %v1778 = vpop.f32.mrb[0].mxu0
        %v1779 = vadd.f32 0.0, %v1778
        %v1780 = vpop.f32.mrb[0].mxu0
        %1781 = vmatprep.mubr.f32.mxu0 %v1512
        %1782 = vmatmul.mubr.f32.gmra.mrb[0].mxu0 %v1511
        %v1783 = vpop.f32.mrb[0].mxu0
        %v1784 = vadd.f32 0.0, %v1783
        %v1785 = vpop.f32.mrb[0].mxu0
        %1786 = vmatprep.mubr.f32.mxu0 %v1514
        %1787 = vmatmul.mubr.f32.gmra.mrb[0].mxu0 %v1513
        %v1788 = vpop.f32.mrb[0].mxu0
        %v1789 = vadd.f32 0.0, %v1788
        %v1790 = vpop.f32.mrb[0].mxu0
        %1791 = vmatprep.mubr.f32.mxu0 %v1516
        %1792 = vmatmul.mubr.f32.gmra.mrb[0].mxu0 %v1515
        %v1793 = vpop.f32.mrb[0].mxu0
        %v1794 = vadd.f32 0.0, %v1793
        %v1795 = vpop.f32.mrb[0].mxu0
        %1796 = vmatprep.mubr.f32.mxu0 %v1518
        %1797 = vmatmul.mubr.f32.gmra.mrb[0].mxu0 %v1517
        %v1798 = vpop.f32.mrb[0].mxu0
        %v1799 = vadd.f32 0.0, %v1798
        %v1800 = vpop.f32.mrb[0].mxu0
        %1801 = vmatprep.mubr.f32.mxu0 %v1520
        %1802 = vmatmul.mubr.f32.gmra.mrb[0].mxu0 %v1519
        %v1803 = vpop.f32.mrb[0].mxu0
        %v1804 = vadd.f32 0.0, %v1803
        %v1805 = vpop.f32.mrb[0].mxu0
        %1806 = vmatprep.mubr.f32.mxu0 %v1522
        %1807 = vmatmul.mubr.f32.gmra.mrb[0].mxu0 %v1521
        %v1808 = vpop.f32.mrb[0].mxu0
        %v1809 = vadd.f32 0.0, %v1808
        %v1810 = vpop.f32.mrb[0].mxu0
        %1811 = vdwg.mxu0
        %v1812 = vadd.f32 %v1523, %v1654
        %v1813 = vadd.f32 %v1524, %v1659
        %v1814 = vadd.f32 %v1525, %v1664
        %v1815 = vadd.f32 %v1526, %v1669
        %v1816 = vadd.f32 %v1527, %v1674
        %v1817 = vadd.f32 %v1528, %v1679
        %v1818 = vadd.f32 %v1529, %v1684
        %v1819 = vadd.f32 %v1530, %v1689
        %v1820 = vadd.f32 %v1531, %v1694
        %v1821 = vadd.f32 %v1532, %v1699
        %v1822 = vadd.f32 %v1533, %v1704
        %v1823 = vadd.f32 %v1534, %v1709
        %v1824 = vadd.f32 %v1535, %v1714
        %v1825 = vadd.f32 %v1536, %v1719
        %v1826 = vadd.f32 %v1537, %v1724
        %v1827 = vadd.f32 %v1538, %v1729
        %v1828 = vadd.f32 %v1539, %v1734
        %v1829 = vadd.f32 %v1540, %v1739
        %v1830 = vadd.f32 %v1541, %v1744
        %v1831 = vadd.f32 %v1542, %v1749
        %v1832 = vadd.f32 %v1543, %v1754
        %v1833 = vadd.f32 %v1544, %v1759
        %v1834 = vadd.f32 %v1545, %v1764
        %v1835 = vadd.f32 %v1546, %v1769
        %v1836 = vadd.f32 %v1547, %v1774
        %v1837 = vadd.f32 %v1548, %v1779
        %v1838 = vadd.f32 %v1549, %v1784
        %v1839 = vadd.f32 %v1550, %v1789
        %v1840 = vadd.f32 %v1551, %v1794
        %v1841 = vadd.f32 %v1552, %v1799
        %v1842 = vadd.f32 %v1553, %v1804
        %v1843 = vadd.f32 %v1554, %v1809
        %1844 = vst [vmem:[#allocation2] sm:$0xff] %v1812
        %1845 = vst [vmem:[#allocation2 + $0x8] sm:$0xff] %v1813
        %1846 = vst [vmem:[#allocation2 + $0x10] sm:$0xff] %v1814
        %1847 = vst [vmem:[#allocation2 + $0x18] sm:$0xff] %v1815
        %1848 = vst [vmem:[#allocation2 + $0x20] sm:$0xff] %v1816
        %1849 = vst [vmem:[#allocation2 + $0x28] sm:$0xff] %v1817
        %1850 = vst [vmem:[#allocation2 + $0x30] sm:$0xff] %v1818
        %1851 = vst [vmem:[#allocation2 + $0x38] sm:$0xff] %v1819
        %1852 = vst [vmem:[#allocation2 + $0x40] sm:$0xff] %v1820
        %1853 = vst [vmem:[#allocation2 + $0x48] sm:$0xff] %v1821
        %1854 = vst [vmem:[#allocation2 + $0x50] sm:$0xff] %v1822
        %1855 = vst [vmem:[#allocation2 + $0x58] sm:$0xff] %v1823
        %1856 = vst [vmem:[#allocation2 + $0x60] sm:$0xff] %v1824
        %1857 = vst [vmem:[#allocation2 + $0x68] sm:$0xff] %v1825
        %1858 = vst [vmem:[#allocation2 + $0x70] sm:$0xff] %v1826
        %1859 = vst [vmem:[#allocation2 + $0x78] sm:$0xff] %v1827
        %1860 = vst [vmem:[#allocation2 + $0x80] sm:$0xff] %v1828
        %1861 = vst [vmem:[#allocation2 + $0x88] sm:$0xff] %v1829
        %1862 = vst [vmem:[#allocation2 + $0x90] sm:$0xff] %v1830
        %1863 = vst [vmem:[#allocation2 + $0x98] sm:$0xff] %v1831
        %1864 = vst [vmem:[#allocation2 + $0xa0] sm:$0xff] %v1832
        %1865 = vst [vmem:[#allocation2 + $0xa8] sm:$0xff] %v1833
        %1866 = vst [vmem:[#allocation2 + $0xb0] sm:$0xff] %v1834
        %1867 = vst [vmem:[#allocation2 + $0xb8] sm:$0xff] %v1835
        %1868 = vst [vmem:[#allocation2 + $0xc0] sm:$0xff] %v1836
        %1869 = vst [vmem:[#allocation2 + $0xc8] sm:$0xff] %v1837
        %1870 = vst [vmem:[#allocation2 + $0xd0] sm:$0xff] %v1838
        %1871 = vst [vmem:[#allocation2 + $0xd8] sm:$0xff] %v1839
        %1872 = vst [vmem:[#allocation2 + $0xe0] sm:$0xff] %v1840
        %1873 = vst [vmem:[#allocation2 + $0xe8] sm:$0xff] %v1841
        %1874 = vst [vmem:[#allocation2 + $0xf0] sm:$0xff] %v1842
        %1875 = vst [vmem:[#allocation2 + $0xf8] sm:$0xff] %v1843
        %p1876 = scmp.eq.s32.totalorder %s35, 1
        // Predicated region
        $region69: #{tpu_custom_call.1} parent=47 // pred_check
          %p1877 = pneg %p1876
        $region70: #{tpu_custom_call.1} parent=47 // pred_check_branch
          %1879 = sbr.rel (%p1877) target = $region72
        $region71: #{tpu_custom_call.1} parent=47 // pred_region
          %v1880 = vld [vmem:[#allocation2] sm:$0xff]
          %v1881 = vld [vmem:[#allocation2 + $0x8] sm:$0xff]
          %v1882 = vld [vmem:[#allocation2 + $0x10] sm:$0xff]
          %v1883 = vld [vmem:[#allocation2 + $0x18] sm:$0xff]
          %v1884 = vld [vmem:[#allocation2 + $0x20] sm:$0xff]
          %v1885 = vld [vmem:[#allocation2 + $0x28] sm:$0xff]
          %v1886 = vld [vmem:[#allocation2 + $0x30] sm:$0xff]
          %v1887 = vld [vmem:[#allocation2 + $0x38] sm:$0xff]
          %v1888 = vld [vmem:[#allocation2 + $0x40] sm:$0xff]
          %v1889 = vld [vmem:[#allocation2 + $0x48] sm:$0xff]
          %v1890 = vld [vmem:[#allocation2 + $0x50] sm:$0xff]
          %v1891 = vld [vmem:[#allocation2 + $0x58] sm:$0xff]
          %v1892 = vld [vmem:[#allocation2 + $0x60] sm:$0xff]
          %v1893 = vld [vmem:[#allocation2 + $0x68] sm:$0xff]
          %v1894 = vld [vmem:[#allocation2 + $0x70] sm:$0xff]
          %v1895 = vld [vmem:[#allocation2 + $0x78] sm:$0xff]
          %v1896 = vld [vmem:[#allocation2 + $0x80] sm:$0xff]
          %v1897 = vld [vmem:[#allocation2 + $0x88] sm:$0xff]
          %v1898 = vld [vmem:[#allocation2 + $0x90] sm:$0xff]
          %v1899 = vld [vmem:[#allocation2 + $0x98] sm:$0xff]
          %v1900 = vld [vmem:[#allocation2 + $0xa0] sm:$0xff]
          %v1901 = vld [vmem:[#allocation2 + $0xa8] sm:$0xff]
          %v1902 = vld [vmem:[#allocation2 + $0xb0] sm:$0xff]
          %v1903 = vld [vmem:[#allocation2 + $0xb8] sm:$0xff]
          %v1904 = vld [vmem:[#allocation2 + $0xc0] sm:$0xff]
          %v1905 = vld [vmem:[#allocation2 + $0xc8] sm:$0xff]
          %v1906 = vld [vmem:[#allocation2 + $0xd0] sm:$0xff]
          %v1907 = vld [vmem:[#allocation2 + $0xd8] sm:$0xff]
          %v1908 = vld [vmem:[#allocation2 + $0xe0] sm:$0xff]
          %v1909 = vld [vmem:[#allocation2 + $0xe8] sm:$0xff]
          %v1910 = vld [vmem:[#allocation2 + $0xf0] sm:$0xff]
          %v1911 = vld [vmem:[#allocation2 + $0xf8] sm:$0xff]
          %v1912 = vld [vmem:[%s6] sm:$0x1]
          %v1914 = vlaneseq
          %v1915 = vshrl.u32 %v1914, 7
          %v1916 = vsub.s32 0, %v1915
          %v1917 = vrot.slane %v1912, %v1916
          %v1919 = vadd.f32 %v1880, %v1917
          %v1920 = vadd.f32 %v1881, %v1917
          %v1921 = vadd.f32 %v1882, %v1917
          %v1922 = vadd.f32 %v1883, %v1917
          %v1923 = vadd.f32 %v1884, %v1917
          %v1924 = vadd.f32 %v1885, %v1917
          %v1925 = vadd.f32 %v1886, %v1917
          %v1926 = vadd.f32 %v1887, %v1917
          %v1927 = vadd.f32 %v1888, %v1917
          %v1928 = vadd.f32 %v1889, %v1917
          %v1929 = vadd.f32 %v1890, %v1917
          %v1930 = vadd.f32 %v1891, %v1917
          %v1931 = vadd.f32 %v1892, %v1917
          %v1932 = vadd.f32 %v1893, %v1917
          %v1933 = vadd.f32 %v1894, %v1917
          %v1934 = vadd.f32 %v1895, %v1917
          %v1935 = vadd.f32 %v1896, %v1917
          %v1936 = vadd.f32 %v1897, %v1917
          %v1937 = vadd.f32 %v1898, %v1917
          %v1938 = vadd.f32 %v1899, %v1917
          %v1939 = vadd.f32 %v1900, %v1917
          %v1940 = vadd.f32 %v1901, %v1917
          %v1941 = vadd.f32 %v1902, %v1917
          %v1942 = vadd.f32 %v1903, %v1917
          %v1943 = vadd.f32 %v1904, %v1917
          %v1944 = vadd.f32 %v1905, %v1917
          %v1945 = vadd.f32 %v1906, %v1917
          %v1946 = vadd.f32 %v1907, %v1917
          %v1947 = vadd.f32 %v1908, %v1917
          %v1948 = vadd.f32 %v1909, %v1917
          %v1949 = vadd.f32 %v1910, %v1917
          %v1950 = vadd.f32 %v1911, %v1917
          %1951 = vst [vmem:[%s453] sm:$0xff] %v1919
          %1952 = vst [vmem:[%s453 + $0x8] sm:$0xff] %v1920
          %1953 = vst [vmem:[%s453 + $0x10] sm:$0xff] %v1921
          %1954 = vst [vmem:[%s453 + $0x18] sm:$0xff] %v1922
          %1955 = vst [vmem:[%s453 + $0x20] sm:$0xff] %v1923
          %1956 = vst [vmem:[%s453 + $0x28] sm:$0xff] %v1924
          %1957 = vst [vmem:[%s453 + $0x30] sm:$0xff] %v1925
          %1958 = vst [vmem:[%s453 + $0x38] sm:$0xff] %v1926
          %1959 = vst [vmem:[%s453 + $0x40] sm:$0xff] %v1927
          %1960 = vst [vmem:[%s453 + $0x48] sm:$0xff] %v1928
          %1961 = vst [vmem:[%s453 + $0x50] sm:$0xff] %v1929
          %1962 = vst [vmem:[%s453 + $0x58] sm:$0xff] %v1930
          %1963 = vst [vmem:[%s453 + $0x60] sm:$0xff] %v1931
          %1964 = vst [vmem:[%s453 + $0x68] sm:$0xff] %v1932
          %1965 = vst [vmem:[%s453 + $0x70] sm:$0xff] %v1933
          %1966 = vst [vmem:[%s453 + $0x78] sm:$0xff] %v1934
          %1967 = vst [vmem:[%s453 + $0x80] sm:$0xff] %v1935
          %1968 = vst [vmem:[%s453 + $0x88] sm:$0xff] %v1936
          %1969 = vst [vmem:[%s453 + $0x90] sm:$0xff] %v1937
          %1970 = vst [vmem:[%s453 + $0x98] sm:$0xff] %v1938
          %1971 = vst [vmem:[%s453 + $0xa0] sm:$0xff] %v1939
          %1972 = vst [vmem:[%s453 + $0xa8] sm:$0xff] %v1940
          %1973 = vst [vmem:[%s453 + $0xb0] sm:$0xff] %v1941
          %1974 = vst [vmem:[%s453 + $0xb8] sm:$0xff] %v1942
          %1975 = vst [vmem:[%s453 + $0xc0] sm:$0xff] %v1943
          %1976 = vst [vmem:[%s453 + $0xc8] sm:$0xff] %v1944
          %1977 = vst [vmem:[%s453 + $0xd0] sm:$0xff] %v1945
          %1978 = vst [vmem:[%s453 + $0xd8] sm:$0xff] %v1946
          %1979 = vst [vmem:[%s453 + $0xe0] sm:$0xff] %v1947
          %1980 = vst [vmem:[%s453 + $0xe8] sm:$0xff] %v1948
          %1981 = vst [vmem:[%s453 + $0xf0] sm:$0xff] %v1949
          %1982 = vst [vmem:[%s453 + $0xf8] sm:$0xff] %v1950
        $region72: #{tpu_custom_call.1} parent=47 // pred_fallthru
          _
        %s1983 = sand.u32 %s227, 1
        %s1984 = scalar_lea.sflag [#allocation5], %s1983
        %s1985 = sand.u32 %s227, 1
        %s1986 = smul.addr %s1985, 256
        %s1987 = scalar_lea.vmem [#allocation11], %s1986
        // Predicated region
        $region73: #{tpu_custom_call.1} parent=47 // pred_check
          %p1988 = pneg %p237
        $region74: #{tpu_custom_call.1} parent=47 // pred_check_branch
          %1990 = sbr.rel (%p1988) target = $region76
        $region75: #{tpu_custom_call.1} parent=47 // pred_region
          %s1991 = smul.u32 32, %s34
          %s1993 = ssub.s32 4096, 4096
          %1994 = vsyncadd %s1984, %s1993
          %s1995 = smul.addr %s1991, 128
          %s1996 = scalar_lea.hbm %s7, %s1995
          %s1997 = sshll.u32 %s1987, 4
          %s1998 = int_to_ptr.vmem [resolvable:$true] %s1997
          %2003 = dma.vmem_to_hbm [thread:$0]  %s1998, 4096, %s1996, %s1984, 128, 128, 8
        $region76: #{tpu_custom_call.1} parent=47 // pred_fallthru
          _
      $region48: #{tpu_custom_call.1} parent=5 // pred_fallthru
        _
      %p2004 = scmp.le.s32.totalorder 2, %s25
      // Predicated region
      $region77: #{tpu_custom_call.1} parent=5 // pred_check
        %p2005 = pneg %p2004
      $region78: #{tpu_custom_call.1} parent=5 // pred_check_branch
        %2007 = sbr.rel (%p2005) target = $region80
      $region79: #{tpu_custom_call.1} parent=5 // pred_region
        %s2008 = ssub.s32 %s25, 2
        // Predicated region
        $region81: #{tpu_custom_call.1} parent=79 // pred_check
          %p2009 = pneg %p243
        $region82: #{tpu_custom_call.1} parent=79 // pred_check_branch
          %2011 = sbr.rel (%p2009) target = $region84
        $region83: #{tpu_custom_call.1} parent=79 // pred_region
          %s2012 = sand.u32 %s228, 1
          %s2013 = scalar_lea.sflag [#allocation5], %s2012
          %s2014 = sand.u32 %s228, 1
          %s2015 = smul.addr %s2014, 256
          %s2016 = scalar_lea.vmem [#allocation11], %s2015
          %2017 = dma.done %s2013, 4096
        $region84: #{tpu_custom_call.1} parent=79 // pred_fallthru
          _
      $region80: #{tpu_custom_call.1} parent=5 // pred_fallthru
        _
    $region6: #{tpu_custom_call.1} parent=1 // loop_footer
      %s29 = sadd.s32 1, %s25
    $region7: #{tpu_custom_call.1} parent=1 // loop_footer_branch
      %24 = sbr.rel target = $region3
    $region8: #{tpu_custom_call.1} parent=1 // loop_exit
      _
    %2018 = vsyncpa [#allocation4], 1
    %s2019 = scalar_lea.sflag [#allocation4], 1
    %2020 = vsyncpa %s2019, 1
    %2021 = vsyncpa [#allocation7], 1
    %s2022 = scalar_lea.sflag [#allocation7], 1
    %2023 = vsyncpa %s2022, 1
    %2024 = vsyncpa [#allocation10], 1
    %s2025 = scalar_lea.sflag [#allocation10], 1
    %2026 = vsyncpa %s2025, 1
    %2027 = vsyncpa [#allocation5], 1
    %s2028 = scalar_lea.sflag [#allocation5], 1
    %2029 = vsyncpa %s2028, 1

</llo_original>
